<compile_context>
chip_gen: v5e
topology: v5e:2x2
jax: 0.10.0
libtpu: 0.0.40
codegen_flags: <defaults>
</compile_context>

<pallas_src>
import functools

import jax
import jax.numpy as jnp
from jax.experimental import pallas as pl
from jax.experimental.pallas import tpu as pltpu


_LANE = 128          # lane width: pad last dims to multiples
_SUBLANE = 8


def _round_up(a, b):
    return (a + b - 1) // b * b


def _vmem_budget_limit():
    """Per-generation per-step working-set budget and scoped-VMEM limit."""
    try:
        cap = pltpu.get_tpu_info().vmem_capacity_bytes
    except Exception:
        cap = 64 * 1024 * 1024                      # conservative (v7x-sized)
    if cap >= 100 * 1024 * 1024:                    # v5e / v6e: 128 MiB VMEM
        return 56 * 1024 * 1024, 96 * 1024 * 1024
    return 24 * 1024 * 1024, 48 * 1024 * 1024       # v7x: 64 MiB VMEM


# ----------------------------------------------------------------------------
# Pallas kernels
# ----------------------------------------------------------------------------
def _conv_stats_kernel(p_ref, w_ref, o_ref, sum_ref, m2_ref, acc_ref, *,
                       tile_m, m_total):
    """K-tiled conv matmul with fused BN-statistics epilogue.

    Grid = (row tiles, K tiles). p_ref: (tm, tk) bf16; w_ref: (tk, Cp) bf16;
    o_ref: (tm, Cp) bf16 conv output tile; sum_ref/m2_ref: (1, 8, Cp) f32
    per-tile channel sum / centered sum-of-squares; acc_ref: (tm, Cp) f32.
    """
    i = pl.program_id(0)
    k = pl.program_id(1)

    @pl.when(k == 0)
    def _():
        acc_ref[...] = jnp.zeros_like(acc_ref)

    acc_ref[...] += jnp.dot(p_ref[...], w_ref[...],
                            preferred_element_type=jnp.float32)

    @pl.when(k == pl.num_programs(1) - 1)
    def _():
        acc = acc_ref[...]
        o_ref[...] = acc.astype(o_ref.dtype)

        # Padded rows (zero patches) give exactly-zero acc rows -> the sum is
        # already correct; mask them out of the centered sum-of-squares so the
        # per-tile M2 only covers valid rows.
        row = jax.lax.broadcasted_iota(jnp.int32, acc.shape, 0)
        maskf = ((row + i * tile_m) < m_total).astype(jnp.float32)
        cnt = jnp.maximum(jnp.minimum(m_total - i * tile_m, tile_m), 1)
        s = jnp.sum(acc, axis=0, keepdims=True)                    # (1, Cp)
        mean_t = s * (1.0 / cnt.astype(jnp.float32))
        d = acc - mean_t
        m2 = jnp.sum(maskf * d * d, axis=0, keepdims=True)         # (1, Cp)

        cp = acc.shape[1]
        sum_ref[...] = jnp.broadcast_to(s, (_SUBLANE, cp))[None]
        m2_ref[...] = jnp.broadcast_to(m2, (_SUBLANE, cp))[None]


def _bn_apply_kernel(y_ref, scale_ref, shift_ref, o_ref):
    """Tiled normalize: out = y * scale + shift (f32 VPU math, lane-dense)."""
    o_ref[...] = y_ref[...].astype(jnp.float32) * scale_ref[...] + shift_ref[...]


# ----------------------------------------------------------------------------
# Wrapper
# ----------------------------------------------------------------------------
def _im2col(x, kernel_size, padding, stride):
    """x: (N, C, H, W) -> patches (N*OH*OW, C*KH*KW), plus (N, OH, OW)."""
    n, c, h, w = x.shape
    kh = kw = kernel_size
    sh, sw = stride
    oh = (h + 2 * padding - kh) // sh + 1
    ow = (w + 2 * padding - kw) // sw + 1
    xp = jnp.pad(x, ((0, 0), (0, 0), (padding, padding), (padding, padding)))
    rows = []
    for i in range(kh):
        for j in range(kw):
            rows.append(xp[:, :, i: i + sh * oh: sh, j: j + sw * ow: sw])
    stk = jnp.stack(rows, axis=0).reshape(kh, kw, n, c, oh, ow)
    # -> (N, OH, OW, C, KH, KW); flattened K axis ordered (ci, kh, kw) to match
    # weight.reshape(C_out, C_in*KH*KW).
    patches = jnp.transpose(stk, (2, 4, 5, 3, 0, 1)).reshape(n * oh * ow, c * kh * kw)
    return patches, (n, oh, ow)


def conv_batchnorm(x, weight, gamma, beta, *, kernel_size, padding, stride,
                   eps=1e-5, tile_m=None, tile_k=None):
    """x: (N, C_in, H, W). weight: (C_out, C_in, KH, KW).
    Returns (N, C_out, OH, OW). BatchNorm uses batch statistics (training mode)."""
    c_out = weight.shape[0]
    budget, vmem_limit = _vmem_budget_limit()

    # ---- im2col (XLA glue), bf16 MXU operands ----
    # TODO(synk): eliminate the materialized im2col (KH*KW x input HBM inflation)
    # by accumulating over a KH*KW grid axis with shifted-window BlockSpecs.
    patches, (n, oh, ow) = _im2col(x.astype(jnp.bfloat16), kernel_size, padding,
                                   stride)
    m, k = patches.shape
    w_mat = weight.reshape(c_out, -1).T.astype(jnp.bfloat16)       # (K, C_out)

    # ---- lane/sublane-friendly padding + tile selection ----
    c_pad = _round_up(c_out, _LANE)
    k_lane = _round_up(k, _LANE)

    if tile_m is None:
        tm = min(512, max(_LANE, _round_up(m, _LANE)))
    else:
        tm = tile_m
    if tile_k is None:
        n_k_t = -(-k_lane // 512)                       # target tk ~= 512
        tk = _round_up(-(-k_lane // n_k_t), _LANE)
    else:
        tk = tile_k

    def _p1_bytes(tm_, tk_):
        return (2 * tm_ * tk_ * 2          # bf16 patches K-tile, double-buffered
                + 2 * tk_ * c_pad * 2      # bf16 weight K-tile, double-buffered
                + 2 * tm_ * c_pad * 2      # bf16 conv-out tile, double-buffered
                + tm_ * c_pad * 4          # f32 accumulator scratch
                + 4 * _SUBLANE * c_pad * 4)

    # Shrink the K tile first (keeps tm = 512 / MXU rows filled); only shrink
    # tm as a last resort.
    while _p1_bytes(tm, tk) > budget and tk > _LANE:
        tk = _round_up(tk // 2, _LANE)
    while _p1_bytes(tm, tk) > budget and tm > _LANE:
        tm //= 2

    n_k = -(-k_lane // tk)
    k_pad = tk * n_k
    m_pad = _round_up(m, tm)
    n_tiles = m_pad // tm

    # Pass-2 row tile: decoupled from tm, sized by its own working set
    # (bf16 in + f32 out, both double-buffered), up to 2048 rows, and chosen as
    # a multiple of tm that divides m_pad (no extra pass-1 padding).
    f = 1
    for cand in range(1, min(n_tiles, max(1, 2048 // tm)) + 1):
        if n_tiles % cand == 0 and 12 * cand * tm * c_pad <= budget:
            f = cand
    t2 = tm * f
    n2 = m_pad // t2

    patches_p = jnp.pad(patches, ((0, m_pad - m), (0, k_pad - k)))
    w_mat_p = jnp.pad(w_mat, ((0, k_pad - k), (0, c_pad - c_out)))

    # ---- Pallas pass 1: K-tiled conv matmul + fused per-tile BN statistics ----
    kernel1 = functools.partial(_conv_stats_kernel, tile_m=tm, m_total=m)
    cost = pl.CostEstimate(
        flops=2 * m_pad * k_pad * c_pad,
        transcendentals=0,
        bytes_accessed=(m_pad * k_pad * 2 + n_tiles * k_pad * c_pad * 2
                        + m_pad * c_pad * 2 + 2 * n_tiles * _SUBLANE * c_pad * 4))

    conv_out, psum, pm2 = pl.pallas_call(
        kernel1,
        out_shape=(
            jax.ShapeDtypeStruct((m_pad, c_pad), jnp.bfloat16),
            jax.ShapeDtypeStruct((n_tiles, _SUBLANE, c_pad), jnp.float32),
            jax.ShapeDtypeStruct((n_tiles, _SUBLANE, c_pad), jnp.float32),
        ),
        grid_spec=pltpu.PrefetchScalarGridSpec(
            num_scalar_prefetch=0,
            grid=(n_tiles, n_k),
            in_specs=[
                pl.BlockSpec((tm, tk), lambda i, kk: (i, kk)),
                pl.BlockSpec((tk, c_pad), lambda i, kk: (kk, 0)),
            ],
            out_specs=(
                pl.BlockSpec((tm, c_pad), lambda i, kk: (i, 0)),
                pl.BlockSpec((1, _SUBLANE, c_pad), lambda i, kk: (i, 0, 0)),
                pl.BlockSpec((1, _SUBLANE, c_pad), lambda i, kk: (i, 0, 0)),
            ),
            scratch_shapes=[pltpu.VMEM((tm, c_pad), jnp.float32)],
        ),
        compiler_params=pltpu.CompilerParams(
            dimension_semantics=("parallel", "arbitrary"),
            vmem_limit_bytes=vmem_limit),
        cost_estimate=cost,
    )(patches_p, w_mat_p)

    # ---- tiny JAX step: grouped-variance combine -> per-channel scale/shift ----
    # Per-tile (count, mean, M2) combined via total SS = within-SS + between-SS.
    tile_cnt = jnp.clip(m - jnp.arange(n_tiles) * tm, 0, tm).astype(jnp.float32)
    tile_sum = psum[:, 0, :]                                   # (T, Cp)
    tile_m2 = pm2[:, 0, :]                                     # (T, Cp)
    tile_mean = tile_sum / jnp.maximum(tile_cnt, 1.0)[:, None]
    inv_m = 1.0 / float(m)
    mean = jnp.sum(tile_sum, axis=0) * inv_m                   # (Cp,)
    between = jnp.sum(tile_cnt[:, None] * (tile_mean - mean[None, :]) ** 2, axis=0)
    var = jnp.maximum((jnp.sum(tile_m2, axis=0) + between) * inv_m, 0.0)  # biased
    gamma_p = jnp.pad(gamma.astype(jnp.float32), (0, c_pad - c_out))
    beta_p = jnp.pad(beta.astype(jnp.float32), (0, c_pad - c_out))
    scale = gamma_p * jax.lax.rsqrt(var + eps)
    shift = beta_p - mean * scale

    # ---- Pallas pass 2: tiled normalize (HBM-bound; big row tiles) ----
    bn_out = pl.pallas_call(
        _bn_apply_kernel,
        out_shape=jax.ShapeDtypeStruct((m_pad, c_pad), jnp.float32),
        grid_spec=pltpu.PrefetchScalarGridSpec(
            num_scalar_prefetch=0,
            grid=(n2,),
            in_specs=[
                pl.BlockSpec((t2, c_pad), lambda i: (i, 0)),
                pl.BlockSpec((1, c_pad), lambda i: (0, 0)),
                pl.BlockSpec((1, c_pad), lambda i: (0, 0)),
            ],
            out_specs=pl.BlockSpec((t2, c_pad), lambda i: (i, 0)),
        ),
        compiler_params=pltpu.CompilerParams(
            dimension_semantics=("parallel",),
            vmem_limit_bytes=vmem_limit),
    )(conv_out, scale.reshape(1, c_pad), shift.reshape(1, c_pad))

    # (M_pad, Cp) -> (N, C_out, OH, OW).
    # TODO(synk): fold the NHWC->NCHW permute into pass 2 (in-kernel transpose to
    # an (N, Cp, OH*OW) output); with padded C_out the required XLA trim slice
    # costs the same as this fused slice+transpose, so it only pays off when
    # C_out and OH*OW are already lane-aligned.
    y = bn_out[:m, :c_out].reshape(n, oh, ow, c_out)
    return jnp.transpose(y, (0, 3, 1, 2))


# ----------------------------------------------------------------------------
# Pure-JAX reference (bf16 MXU operands, f32 accumulation, f32 BN math)
# ----------------------------------------------------------------------------
def _reference(x, weight, gamma, beta, *, padding, stride, eps=1e-5):
    y = jax.lax.conv_general_dilated(
        x.astype(jnp.bfloat16), weight.astype(jnp.bfloat16),
        window_strides=stride,
        padding=[(padding, padding), (padding, padding)],
        dimension_numbers=("NCHW", "OIHW", "NCHW"),
        preferred_element_type=jnp.float32)
    mean = jnp.mean(y, axis=(0, 2, 3), keepdims=True)
    var = jnp.mean((y - mean) ** 2, axis=(0, 2, 3), keepdims=True)  # biased
    g = gamma.reshape(1, -1, 1, 1).astype(jnp.float32)
    b = beta.reshape(1, -1, 1, 1).astype(jnp.float32)
    return (y - mean) * jax.lax.rsqrt(var + eps) * g + b


if __name__ == "__main__":
    def _run_case(name, n, c_in, h, w, c_out, ksize, pad, stride, **tiles):
        key = jax.random.PRNGKey(0)
        kx, kw_, kg, kb = jax.random.split(key, 4)
        x = jax.random.normal(kx, (n, c_in, h, w), dtype=jnp.float32)
        weight = jax.random.normal(kw_, (c_out, c_in, ksize, ksize),
                                   dtype=jnp.float32) * 0.1
        gamma = 1.0 + 0.1 * jax.random.normal(kg, (c_out,), dtype=jnp.float32)
        beta = 0.1 * jax.random.normal(kb, (c_out,), dtype=jnp.float32)

        out = conv_batchnorm(x, weight, gamma, beta, kernel_size=ksize,
                             padding=pad, stride=stride, **tiles)
        out = jax.block_until_ready(out)
        ref = _reference(x, weight, gamma, beta, padding=pad, stride=stride)
        assert out.shape == ref.shape, (name, out.shape, ref.shape)
        max_diff = float(jnp.max(jnp.abs(out - ref)))
        # Tolerance covers bf16 storage of the conv intermediate between the two
        # Pallas passes (~2^-9 relative on y, ~1e-2 absolute after normalization).
        assert jnp.allclose(out, ref, atol=2e-2, rtol=2e-2), \
            f"{name}: max abs diff {max_diff}"

    # Small default shape consistent with the module.
    _run_case("small", 2, 4, 16, 16, 8, 3, 1, (1, 1))
    # Multi-row-tile, multi-K-tile, masked-last-tile stats combine, and a
    # non-square stride — exercises the reduction-grid + Chan-combine paths.
    _run_case("multitile", 2, 16, 12, 12, 8, 3, 1, (2, 1), tile_m=128, tile_k=128)

    print("KERNEL_OK")
</pallas_src>

<mosaic_0001>
module attributes {stable_mosaic.version = 11 : i64} {
  func.func @_conv_stats_kernel(%arg0: i32, %arg1: i32, %arg2: memref<512x128xbf16, #tpu.memory_space<vmem>>, %arg3: memref<128x128xbf16, #tpu.memory_space<vmem>>, %arg4: memref<512x128xbf16, #tpu.memory_space<vmem>>, %arg5: memref<1x8x128xf32, #tpu.memory_space<vmem>>, %arg6: memref<1x8x128xf32, #tpu.memory_space<vmem>>, %arg7: memref<512x128xf32, #tpu.memory_space<vmem>>) attributes {dimension_semantics = [#tpu.dimension_semantics<parallel>, #tpu.dimension_semantics<arbitrary>], iteration_bounds = array<i64: 1, 1>, scalar_prefetch = 0 : i64, scratch_operands = 1 : i64, tpu.core_type = #tpu.core_type<tc>, window_params = [{transform_indices = @transform_0, window_bounds = array<i64: 512, 128>}, {transform_indices = @transform_1, window_bounds = array<i64: 128, 128>}, {transform_indices = @transform_2, window_bounds = array<i64: 512, 128>}, {transform_indices = @transform_3, window_bounds = array<i64: 1, 8, 128>}, {transform_indices = @transform_4, window_bounds = array<i64: 1, 8, 128>}]} {
    %c0_i32 = arith.constant 0 : i32
    %0 = arith.cmpi eq, %arg1, %c0_i32 : i32
    %1 = arith.extui %0 : i1 to i32
    %c0_i32_0 = arith.constant 0 : i32
    %2 = arith.cmpi ne, %1, %c0_i32_0 : i32
    scf.if %2 {
      %cst_10 = arith.constant 0.000000e+00 : f32
      %12 = vector.broadcast %cst_10 : f32 to vector<512x128xf32>
      %c0_11 = arith.constant 0 : index
      %c0_12 = arith.constant 0 : index
      %13 = vector.load %arg7[%c0_11, %c0_12] : memref<512x128xf32, #tpu.memory_space<vmem>>, vector<512x128xf32>
      tpu.vector_store %arg7[%c0_11, %c0_12], %12 {strides = array<i32>} : memref<512x128xf32, #tpu.memory_space<vmem>>, vector<512x128xf32>,
    } else {
    }
    %c0 = arith.constant 0 : index
    %c0_1 = arith.constant 0 : index
    %3 = vector.load %arg7[%c0, %c0_1] : memref<512x128xf32, #tpu.memory_space<vmem>>, vector<512x128xf32>
    %c0_2 = arith.constant 0 : index
    %c0_3 = arith.constant 0 : index
    %4 = vector.load %arg2[%c0_2, %c0_3] : memref<512x128xbf16, #tpu.memory_space<vmem>>, vector<512x128xbf16>
    %c0_4 = arith.constant 0 : index
    %c0_5 = arith.constant 0 : index
    %5 = vector.load %arg3[%c0_4, %c0_5] : memref<128x128xbf16, #tpu.memory_space<vmem>>, vector<128x128xbf16>
    %cst = arith.constant dense<0.000000e+00> : vector<512x128xf32>
    %6 = tpu.matmul %4, %5, %cst {dimension_numbers = #tpu.dot_dimension_numbers<[1], [0], [0], [1], [0, 0, 1, 1], [], []>} : vector<512x128xbf16>, vector<128x128xbf16>, vector<512x128xf32> -> vector<512x128xf32>
    %7 = arith.addf %3, %6 : vector<512x128xf32>
    %c0_6 = arith.constant 0 : index
    %c0_7 = arith.constant 0 : index
    %8 = vector.load %arg7[%c0_6, %c0_7] : memref<512x128xf32, #tpu.memory_space<vmem>>, vector<512x128xf32>
    tpu.vector_store %arg7[%c0_6, %c0_7], %7 {strides = array<i32>} : memref<512x128xf32, #tpu.memory_space<vmem>>, vector<512x128xf32>,
    %c0_i32_8 = arith.constant 0 : i32
    %9 = arith.cmpi eq, %arg1, %c0_i32_8 : i32
    %10 = arith.extui %9 : i1 to i32
    %c0_i32_9 = arith.constant 0 : i32
    %11 = arith.cmpi ne, %10, %c0_i32_9 : i32
    scf.if %11 {
      %c0_10 = arith.constant 0 : index
      %c0_11 = arith.constant 0 : index
      %12 = vector.load %arg7[%c0_10, %c0_11] : memref<512x128xf32, #tpu.memory_space<vmem>>, vector<512x128xf32>
      %13 = arith.truncf %12 : vector<512x128xf32> to vector<512x128xbf16>
      %c0_12 = arith.constant 0 : index
      %c0_13 = arith.constant 0 : index
      %14 = vector.load %arg4[%c0_12, %c0_13] : memref<512x128xbf16, #tpu.memory_space<vmem>>, vector<512x128xbf16>
      tpu.vector_store %arg4[%c0_12, %c0_13], %13 {strides = array<i32>} : memref<512x128xbf16, #tpu.memory_space<vmem>>, vector<512x128xbf16>,
      %15 = tpu.iota {dimensions = array<i32: 0>} : vector<512x128xi32>
      %c512_i32 = arith.constant 512 : i32
      %16 = arith.muli %arg0, %c512_i32 : i32
      %17 = vector.broadcast %16 : i32 to vector<512x128xi32>
      %18 = arith.addi %15, %17 : vector<512x128xi32>
      %c512_i32_14 = arith.constant 512 : i32
      %19 = vector.broadcast %c512_i32_14 : i32 to vector<512x128xi32>
      %20 = arith.cmpi slt, %18, %19 : vector<512x128xi32>
      %21 = arith.extui %20 : vector<512x128xi1> to vector<512x128xi32>
      %22 = arith.sitofp %21 : vector<512x128xi32> to vector<512x128xf32>
      %c512_i32_15 = arith.constant 512 : i32
      %23 = arith.muli %arg0, %c512_i32_15 : i32
      %c512_i32_16 = arith.constant 512 : i32
      %24 = arith.subi %c512_i32_16, %23 : i32
      %c512_i32_17 = arith.constant 512 : i32
      %25 = arith.minsi %24, %c512_i32_17 : i32
      %c1_i32 = arith.constant 1 : i32
      %26 = arith.maxsi %25, %c1_i32 : i32
      %cst_18 = arith.constant dense<0.000000e+00> : vector<128xf32>
      %27 = vector.multi_reduction <add>, %12, %cst_18 [0] : vector<512x128xf32> to vector<128xf32>
      %28 = vector.shape_cast %27 : vector<128xf32> to vector<1x128xf32>
      %29 = arith.sitofp %26 : i32 to f32
      %cst_19 = arith.constant 1.000000e+00 : f32
      %30 = arith.divf %cst_19, %29 : f32
      %31 = vector.broadcast %30 : f32 to vector<1x128xf32>
      %32 = arith.mulf %28, %31 : vector<1x128xf32>
      %33 = vector.broadcast %32 : vector<1x128xf32> to vector<512x128xf32>
      %34 = arith.subf %12, %33 : vector<512x128xf32>
      %35 = arith.mulf %22, %34 : vector<512x128xf32>
      %36 = arith.mulf %35, %34 : vector<512x128xf32>
      %cst_20 = arith.constant dense<0.000000e+00> : vector<128xf32>
      %37 = vector.multi_reduction <add>, %36, %cst_20 [0] : vector<512x128xf32> to vector<128xf32>
      %38 = vector.shape_cast %37 : vector<128xf32> to vector<1x128xf32>
      %39 = vector.shape_cast %28 : vector<1x128xf32> to vector<1x128xf32>
      %40 = vector.broadcast %39 : vector<1x128xf32> to vector<8x128xf32>
      %41 = vector.shape_cast %40 : vector<8x128xf32> to vector<1x8x128xf32>
      %c0_21 = arith.constant 0 : index
      %c0_22 = arith.constant 0 : index
      %c0_23 = arith.constant 0 : index
      %42 = vector.load %arg5[%c0_21, %c0_22, %c0_23] : memref<1x8x128xf32, #tpu.memory_space<vmem>>, vector<1x8x128xf32>
      tpu.vector_store %arg5[%c0_21, %c0_22, %c0_23], %41 {strides = array<i32>} : memref<1x8x128xf32, #tpu.memory_space<vmem>>, vector<1x8x128xf32>,
      %43 = vector.shape_cast %38 : vector<1x128xf32> to vector<1x128xf32>
      %44 = vector.broadcast %43 : vector<1x128xf32> to vector<8x128xf32>
      %45 = vector.shape_cast %44 : vector<8x128xf32> to vector<1x8x128xf32>
      %c0_24 = arith.constant 0 : index
      %c0_25 = arith.constant 0 : index
      %c0_26 = arith.constant 0 : index
      %46 = vector.load %arg6[%c0_24, %c0_25, %c0_26] : memref<1x8x128xf32, #tpu.memory_space<vmem>>, vector<1x8x128xf32>
      tpu.vector_store %arg6[%c0_24, %c0_25, %c0_26], %45 {strides = array<i32>} : memref<1x8x128xf32, #tpu.memory_space<vmem>>, vector<1x8x128xf32>,
    } else {
    }
    return
  }
  func.func @transform_0(%arg0: i32, %arg1: i32) -> (i32, i32) {
    %c0_i32 = arith.constant 0 : i32
    return %arg0, %arg1 : i32, i32
  }
  func.func @transform_1(%arg0: i32, %arg1: i32) -> (i32, i32) {
    %c0_i32 = arith.constant 0 : i32
    %c0_i32_0 = arith.constant 0 : i32
    return %arg1, %c0_i32 : i32, i32
  }
  func.func @transform_2(%arg0: i32, %arg1: i32) -> (i32, i32) {
    %c0_i32 = arith.constant 0 : i32
    %c0_i32_0 = arith.constant 0 : i32
    return %arg0, %c0_i32 : i32, i32
  }
  func.func @transform_3(%arg0: i32, %arg1: i32) -> (i32, i32, i32) {
    %c0_i32 = arith.constant 0 : i32
    %c0_i32_0 = arith.constant 0 : i32
    %c0_i32_1 = arith.constant 0 : i32
    return %arg0, %c0_i32, %c0_i32_0 : i32, i32, i32
  }
  func.func @transform_4(%arg0: i32, %arg1: i32) -> (i32, i32, i32) {
    %c0_i32 = arith.constant 0 : i32
    %c0_i32_0 = arith.constant 0 : i32
    %c0_i32_1 = arith.constant 0 : i32
    return %arg0, %c0_i32, %c0_i32_0 : i32, i32, i32
  }
}

</mosaic_0001>

<llo_original>
// kernel: tpu_custom_call.1
$region0: #{tpu_custom_call.1}
  #allocation0 [shape = 'u32[]', space=smem, size = 0x4, offset = 0x4, fixed_abs, tag = 'smem constant byte address 0x4 - core index']
  #allocation1 [shape = 'u32[72,128]{1,0:T(1,128)}', space=vmem, size = 0x9000, scoped, tag = 'internal scratch']
  #allocation2 [shape = 'f32[512,128]{1,0:T(8,128)}', space=vmem, size = 0x40000, scoped, tag = 'scratch operand']
  %s0 = inlined_call_operand.hbm [shape: bf16[512,128], index: 0, kind: input, shape index: {}]
  %s1 = inlined_call_operand.hbm [shape: bf16[128,128], index: 1, kind: input, shape index: {}]
  %s2 = inlined_call_operand.hbm [shape: bf16[512,128], index: 2, kind: output, shape index: {0}]
  %s3 = inlined_call_operand.hbm [shape: f32[1,8,128], index: 3, kind: output, shape index: {1}]
  %s4 = inlined_call_operand.hbm [shape: f32[1,8,128], index: 4, kind: output, shape index: {2}]
  %5 = xla_tuple %s2, %s3, %s4
  %s6 = sld [smem:[#allocation0]]
  $region50: #{tpu_custom_call.1} parent=0
    _
  %s8 = ssub.s32 1, %s6
  %s9 = scalar_select 0, %s8, %s6
  $region1: #{tpu_custom_call.1} parent=0
    #allocation3 [shape = 'u8[131072]{0}', space=vmem, size = 0x20000, scoped, tag = 'input window, operand 0, single buffered']
    #allocation4 [shape = 's32[1]{0}', space=sflag, size = 0x4, scoped, tag = 'scoped memory for tpu_custom_call.1']
    #allocation5 [shape = 's32[1]{0}', space=sflag, size = 0x4, scoped, tag = 'scoped memory for tpu_custom_call.1']
    #allocation6 [shape = 'u8[32768]{0}', space=vmem, size = 0x8000, scoped, tag = 'input window, operand 1, single buffered']
    #allocation7 [shape = 's32[1]{0}', space=sflag, size = 0x4, scoped, tag = 'scoped memory for tpu_custom_call.1']
    #allocation8 [shape = 'u8[131072]{0}', space=vmem, size = 0x20000, scoped, tag = 'output window, operand 0, single buffered']
    #allocation9 [shape = 'u8[4096]{0}', space=vmem, size = 0x1000, scoped, tag = 'output window, operand 1, single buffered']
    #allocation10 [shape = 's32[1]{0}', space=sflag, size = 0x4, scoped, tag = 'scoped memory for tpu_custom_call.1']
    #allocation11 [shape = 'u8[4096]{0}', space=vmem, size = 0x1000, scoped, tag = 'output window, operand 2, single buffered']
    %10 = vsyncpa [#allocation4], 0
    %11 = vsyncpa [#allocation7], 0
    %12 = vsyncpa [#allocation5], 0
    %13 = vsyncpa [#allocation10], 0
    // Predicated region
    $region2: #{tpu_custom_call.1} parent=1 // pred_check
      _
    $region3: #{tpu_custom_call.1} parent=1 // pred_check_branch
      %15 = sbr.rel (0) target = $region5
    $region4: #{tpu_custom_call.1} parent=1 // pred_region
      %17 = vsyncadd [#allocation4], 0
      %s18 = sshll.u32 %s0, 4
      %s19 = int_to_ptr.hbm [resolvable:$true] %s18
      %s20 = sshll.u32 [#allocation3], 4
      %s21 = int_to_ptr.vmem [resolvable:$true] %s20
      %26 = dma.hbm_to_vmem [thread:$0]  %s19, 4096, %s21, [#allocation4], 64, 64, 4
    $region5: #{tpu_custom_call.1} parent=1 // pred_fallthru
      _
    // Predicated region
    $region6: #{tpu_custom_call.1} parent=1 // pred_check
      _
    $region7: #{tpu_custom_call.1} parent=1 // pred_check_branch
      %28 = sbr.rel (0) target = $region9
    $region8: #{tpu_custom_call.1} parent=1 // pred_region
      %30 = vsyncadd [#allocation7], 0
      %s31 = sshll.u32 %s1, 4
      %s32 = int_to_ptr.hbm [resolvable:$true] %s31
      %s33 = sshll.u32 [#allocation6], 4
      %s34 = int_to_ptr.vmem [resolvable:$true] %s33
      %39 = dma.hbm_to_vmem [thread:$0]  %s32, 1024, %s34, [#allocation7], 64, 64, 4
    $region9: #{tpu_custom_call.1} parent=1 // pred_fallthru
      _
    // Predicated region
    $region10: #{tpu_custom_call.1} parent=1 // pred_check
      _
    $region11: #{tpu_custom_call.1} parent=1 // pred_check_branch
      %41 = sbr.rel (0) target = $region13
    $region12: #{tpu_custom_call.1} parent=1 // pred_region
      %43 = dma.done [#allocation4], 4096
    $region13: #{tpu_custom_call.1} parent=1 // pred_fallthru
      _
    // Predicated region
    $region14: #{tpu_custom_call.1} parent=1 // pred_check
      _
    $region15: #{tpu_custom_call.1} parent=1 // pred_check_branch
      %45 = sbr.rel (0) target = $region17
    $region16: #{tpu_custom_call.1} parent=1 // pred_region
      %47 = dma.done [#allocation7], 1024
    $region17: #{tpu_custom_call.1} parent=1 // pred_fallthru
      _
    %p48 = scmp.eq.s32.totalorder 0, 0
    // Predicated region
    $region18: #{tpu_custom_call.1} parent=1 // pred_check
      %p49 = pneg %p48
    $region19: #{tpu_custom_call.1} parent=1 // pred_check_branch
      %51 = sbr.rel (%p49) target = $region21
    $region20: #{tpu_custom_call.1} parent=1 // pred_region
      %52 = vst [vmem:[#allocation2] sm:$0xff] 0.0
      %53 = vst [vmem:[#allocation2 + $0x8] sm:$0xff] 0.0
      %54 = vst [vmem:[#allocation2 + $0x10] sm:$0xff] 0.0
      %55 = vst [vmem:[#allocation2 + $0x18] sm:$0xff] 0.0
      %56 = vst [vmem:[#allocation2 + $0x20] sm:$0xff] 0.0
      %57 = vst [vmem:[#allocation2 + $0x28] sm:$0xff] 0.0
      %58 = vst [vmem:[#allocation2 + $0x30] sm:$0xff] 0.0
      %59 = vst [vmem:[#allocation2 + $0x38] sm:$0xff] 0.0
      %60 = vst [vmem:[#allocation2 + $0x40] sm:$0xff] 0.0
      %61 = vst [vmem:[#allocation2 + $0x48] sm:$0xff] 0.0
      %62 = vst [vmem:[#allocation2 + $0x50] sm:$0xff] 0.0
      %63 = vst [vmem:[#allocation2 + $0x58] sm:$0xff] 0.0
      %64 = vst [vmem:[#allocation2 + $0x60] sm:$0xff] 0.0
      %65 = vst [vmem:[#allocation2 + $0x68] sm:$0xff] 0.0
      %66 = vst [vmem:[#allocation2 + $0x70] sm:$0xff] 0.0
      %67 = vst [vmem:[#allocation2 + $0x78] sm:$0xff] 0.0
      %68 = vst [vmem:[#allocation2 + $0x80] sm:$0xff] 0.0
      %69 = vst [vmem:[#allocation2 + $0x88] sm:$0xff] 0.0
      %70 = vst [vmem:[#allocation2 + $0x90] sm:$0xff] 0.0
      %71 = vst [vmem:[#allocation2 + $0x98] sm:$0xff] 0.0
      %72 = vst [vmem:[#allocation2 + $0xa0] sm:$0xff] 0.0
      %73 = vst [vmem:[#allocation2 + $0xa8] sm:$0xff] 0.0
      %74 = vst [vmem:[#allocation2 + $0xb0] sm:$0xff] 0.0
      %75 = vst [vmem:[#allocation2 + $0xb8] sm:$0xff] 0.0
      %76 = vst [vmem:[#allocation2 + $0xc0] sm:$0xff] 0.0
      %77 = vst [vmem:[#allocation2 + $0xc8] sm:$0xff] 0.0
      %78 = vst [vmem:[#allocation2 + $0xd0] sm:$0xff] 0.0
      %79 = vst [vmem:[#allocation2 + $0xd8] sm:$0xff] 0.0
      %80 = vst [vmem:[#allocation2 + $0xe0] sm:$0xff] 0.0
      %81 = vst [vmem:[#allocation2 + $0xe8] sm:$0xff] 0.0
      %82 = vst [vmem:[#allocation2 + $0xf0] sm:$0xff] 0.0
      %83 = vst [vmem:[#allocation2 + $0xf8] sm:$0xff] 0.0
      %84 = vst [vmem:[#allocation2 + $0x100] sm:$0xff] 0.0
      %85 = vst [vmem:[#allocation2 + $0x108] sm:$0xff] 0.0
      %86 = vst [vmem:[#allocation2 + $0x110] sm:$0xff] 0.0
      %87 = vst [vmem:[#allocation2 + $0x118] sm:$0xff] 0.0
      %88 = vst [vmem:[#allocation2 + $0x120] sm:$0xff] 0.0
      %89 = vst [vmem:[#allocation2 + $0x128] sm:$0xff] 0.0
      %90 = vst [vmem:[#allocation2 + $0x130] sm:$0xff] 0.0
      %91 = vst [vmem:[#allocation2 + $0x138] sm:$0xff] 0.0
      %92 = vst [vmem:[#allocation2 + $0x140] sm:$0xff] 0.0
      %93 = vst [vmem:[#allocation2 + $0x148] sm:$0xff] 0.0
      %94 = vst [vmem:[#allocation2 + $0x150] sm:$0xff] 0.0
      %95 = vst [vmem:[#allocation2 + $0x158] sm:$0xff] 0.0
      %96 = vst [vmem:[#allocation2 + $0x160] sm:$0xff] 0.0
      %97 = vst [vmem:[#allocation2 + $0x168] sm:$0xff] 0.0
      %98 = vst [vmem:[#allocation2 + $0x170] sm:$0xff] 0.0
      %99 = vst [vmem:[#allocation2 + $0x178] sm:$0xff] 0.0
      %100 = vst [vmem:[#allocation2 + $0x180] sm:$0xff] 0.0
      %101 = vst [vmem:[#allocation2 + $0x188] sm:$0xff] 0.0
      %102 = vst [vmem:[#allocation2 + $0x190] sm:$0xff] 0.0
      %103 = vst [vmem:[#allocation2 + $0x198] sm:$0xff] 0.0
      %104 = vst [vmem:[#allocation2 + $0x1a0] sm:$0xff] 0.0
      %105 = vst [vmem:[#allocation2 + $0x1a8] sm:$0xff] 0.0
      %106 = vst [vmem:[#allocation2 + $0x1b0] sm:$0xff] 0.0
      %107 = vst [vmem:[#allocation2 + $0x1b8] sm:$0xff] 0.0
      %108 = vst [vmem:[#allocation2 + $0x1c0] sm:$0xff] 0.0
      %109 = vst [vmem:[#allocation2 + $0x1c8] sm:$0xff] 0.0
      %110 = vst [vmem:[#allocation2 + $0x1d0] sm:$0xff] 0.0
      %111 = vst [vmem:[#allocation2 + $0x1d8] sm:$0xff] 0.0
      %112 = vst [vmem:[#allocation2 + $0x1e0] sm:$0xff] 0.0
      %113 = vst [vmem:[#allocation2 + $0x1e8] sm:$0xff] 0.0
      %114 = vst [vmem:[#allocation2 + $0x1f0] sm:$0xff] 0.0
      %115 = vst [vmem:[#allocation2 + $0x1f8] sm:$0xff] 0.0
    $region21: #{tpu_custom_call.1} parent=1 // pred_fallthru
      _
    %v116 = vld [vmem:[#allocation2] sm:$0xff]
    %v117 = vld [vmem:[#allocation2 + $0x8] sm:$0xff]
    %v118 = vld [vmem:[#allocation2 + $0x10] sm:$0xff]
    %v119 = vld [vmem:[#allocation2 + $0x18] sm:$0xff]
    %v120 = vld [vmem:[#allocation2 + $0x20] sm:$0xff]
    %v121 = vld [vmem:[#allocation2 + $0x28] sm:$0xff]
    %v122 = vld [vmem:[#allocation2 + $0x30] sm:$0xff]
    %v123 = vld [vmem:[#allocation2 + $0x38] sm:$0xff]
    %v124 = vld [vmem:[#allocation2 + $0x40] sm:$0xff]
    %v125 = vld [vmem:[#allocation2 + $0x48] sm:$0xff]
    %v126 = vld [vmem:[#allocation2 + $0x50] sm:$0xff]
    %v127 = vld [vmem:[#allocation2 + $0x58] sm:$0xff]
    %v128 = vld [vmem:[#allocation2 + $0x60] sm:$0xff]
    %v129 = vld [vmem:[#allocation2 + $0x68] sm:$0xff]
    %v130 = vld [vmem:[#allocation2 + $0x70] sm:$0xff]
    %v131 = vld [vmem:[#allocation2 + $0x78] sm:$0xff]
    %v132 = vld [vmem:[#allocation2 + $0x80] sm:$0xff]
    %v133 = vld [vmem:[#allocation2 + $0x88] sm:$0xff]
    %v134 = vld [vmem:[#allocation2 + $0x90] sm:$0xff]
    %v135 = vld [vmem:[#allocation2 + $0x98] sm:$0xff]
    %v136 = vld [vmem:[#allocation2 + $0xa0] sm:$0xff]
    %v137 = vld [vmem:[#allocation2 + $0xa8] sm:$0xff]
    %v138 = vld [vmem:[#allocation2 + $0xb0] sm:$0xff]
    %v139 = vld [vmem:[#allocation2 + $0xb8] sm:$0xff]
    %v140 = vld [vmem:[#allocation2 + $0xc0] sm:$0xff]
    %v141 = vld [vmem:[#allocation2 + $0xc8] sm:$0xff]
    %v142 = vld [vmem:[#allocation2 + $0xd0] sm:$0xff]
    %v143 = vld [vmem:[#allocation2 + $0xd8] sm:$0xff]
    %v144 = vld [vmem:[#allocation2 + $0xe0] sm:$0xff]
    %v145 = vld [vmem:[#allocation2 + $0xe8] sm:$0xff]
    %v146 = vld [vmem:[#allocation2 + $0xf0] sm:$0xff]
    %v147 = vld [vmem:[#allocation2 + $0xf8] sm:$0xff]
    %v148 = vld [vmem:[#allocation2 + $0x100] sm:$0xff]
    %v149 = vld [vmem:[#allocation2 + $0x108] sm:$0xff]
    %v150 = vld [vmem:[#allocation2 + $0x110] sm:$0xff]
    %v151 = vld [vmem:[#allocation2 + $0x118] sm:$0xff]
    %v152 = vld [vmem:[#allocation2 + $0x120] sm:$0xff]
    %v153 = vld [vmem:[#allocation2 + $0x128] sm:$0xff]
    %v154 = vld [vmem:[#allocation2 + $0x130] sm:$0xff]
    %v155 = vld [vmem:[#allocation2 + $0x138] sm:$0xff]
    %v156 = vld [vmem:[#allocation2 + $0x140] sm:$0xff]
    %v157 = vld [vmem:[#allocation2 + $0x148] sm:$0xff]
    %v158 = vld [vmem:[#allocation2 + $0x150] sm:$0xff]
    %v159 = vld [vmem:[#allocation2 + $0x158] sm:$0xff]
    %v160 = vld [vmem:[#allocation2 + $0x160] sm:$0xff]
    %v161 = vld [vmem:[#allocation2 + $0x168] sm:$0xff]
    %v162 = vld [vmem:[#allocation2 + $0x170] sm:$0xff]
    %v163 = vld [vmem:[#allocation2 + $0x178] sm:$0xff]
    %v164 = vld [vmem:[#allocation2 + $0x180] sm:$0xff]
    %v165 = vld [vmem:[#allocation2 + $0x188] sm:$0xff]
    %v166 = vld [vmem:[#allocation2 + $0x190] sm:$0xff]
    %v167 = vld [vmem:[#allocation2 + $0x198] sm:$0xff]
    %v168 = vld [vmem:[#allocation2 + $0x1a0] sm:$0xff]
    %v169 = vld [vmem:[#allocation2 + $0x1a8] sm:$0xff]
    %v170 = vld [vmem:[#allocation2 + $0x1b0] sm:$0xff]
    %v171 = vld [vmem:[#allocation2 + $0x1b8] sm:$0xff]
    %v172 = vld [vmem:[#allocation2 + $0x1c0] sm:$0xff]
    %v173 = vld [vmem:[#allocation2 + $0x1c8] sm:$0xff]
    %v174 = vld [vmem:[#allocation2 + $0x1d0] sm:$0xff]
    %v175 = vld [vmem:[#allocation2 + $0x1d8] sm:$0xff]
    %v176 = vld [vmem:[#allocation2 + $0x1e0] sm:$0xff]
    %v177 = vld [vmem:[#allocation2 + $0x1e8] sm:$0xff]
    %v178 = vld [vmem:[#allocation2 + $0x1f0] sm:$0xff]
    %v179 = vld [vmem:[#allocation2 + $0x1f8] sm:$0xff]
    %v180 = vld [vmem:[#allocation3] sm:$0xf]
    %v181 = vld [vmem:[#allocation3 + $0x4] sm:$0xf]
    %v182 = vld [vmem:[#allocation3 + $0x8] sm:$0xf]
    %v183 = vld [vmem:[#allocation3 + $0xc] sm:$0xf]
    %v184 = vld [vmem:[#allocation3 + $0x10] sm:$0xf]
    %v185 = vld [vmem:[#allocation3 + $0x14] sm:$0xf]
    %v186 = vld [vmem:[#allocation3 + $0x18] sm:$0xf]
    %v187 = vld [vmem:[#allocation3 + $0x1c] sm:$0xf]
    %v188 = vld [vmem:[#allocation3 + $0x20] sm:$0xf]
    %v189 = vld [vmem:[#allocation3 + $0x24] sm:$0xf]
    %v190 = vld [vmem:[#allocation3 + $0x28] sm:$0xf]
    %v191 = vld [vmem:[#allocation3 + $0x2c] sm:$0xf]
    %v192 = vld [vmem:[#allocation3 + $0x30] sm:$0xf]
    %v193 = vld [vmem:[#allocation3 + $0x34] sm:$0xf]
    %v194 = vld [vmem:[#allocation3 + $0x38] sm:$0xf]
    %v195 = vld [vmem:[#allocation3 + $0x3c] sm:$0xf]
    %v196 = vld [vmem:[#allocation3 + $0x40] sm:$0xf]
    %v197 = vld [vmem:[#allocation3 + $0x44] sm:$0xf]
    %v198 = vld [vmem:[#allocation3 + $0x48] sm:$0xf]
    %v199 = vld [vmem:[#allocation3 + $0x4c] sm:$0xf]
    %v200 = vld [vmem:[#allocation3 + $0x50] sm:$0xf]
    %v201 = vld [vmem:[#allocation3 + $0x54] sm:$0xf]
    %v202 = vld [vmem:[#allocation3 + $0x58] sm:$0xf]
    %v203 = vld [vmem:[#allocation3 + $0x5c] sm:$0xf]
    %v204 = vld [vmem:[#allocation3 + $0x60] sm:$0xf]
    %v205 = vld [vmem:[#allocation3 + $0x64] sm:$0xf]
    %v206 = vld [vmem:[#allocation3 + $0x68] sm:$0xf]
    %v207 = vld [vmem:[#allocation3 + $0x6c] sm:$0xf]
    %v208 = vld [vmem:[#allocation3 + $0x70] sm:$0xf]
    %v209 = vld [vmem:[#allocation3 + $0x74] sm:$0xf]
    %v210 = vld [vmem:[#allocation3 + $0x78] sm:$0xf]
    %v211 = vld [vmem:[#allocation3 + $0x7c] sm:$0xf]
    %v212 = vld [vmem:[#allocation3 + $0x80] sm:$0xf]
    %v213 = vld [vmem:[#allocation3 + $0x84] sm:$0xf]
    %v214 = vld [vmem:[#allocation3 + $0x88] sm:$0xf]
    %v215 = vld [vmem:[#allocation3 + $0x8c] sm:$0xf]
    %v216 = vld [vmem:[#allocation3 + $0x90] sm:$0xf]
    %v217 = vld [vmem:[#allocation3 + $0x94] sm:$0xf]
    %v218 = vld [vmem:[#allocation3 + $0x98] sm:$0xf]
    %v219 = vld [vmem:[#allocation3 + $0x9c] sm:$0xf]
    %v220 = vld [vmem:[#allocation3 + $0xa0] sm:$0xf]
    %v221 = vld [vmem:[#allocation3 + $0xa4] sm:$0xf]
    %v222 = vld [vmem:[#allocation3 + $0xa8] sm:$0xf]
    %v223 = vld [vmem:[#allocation3 + $0xac] sm:$0xf]
    %v224 = vld [vmem:[#allocation3 + $0xb0] sm:$0xf]
    %v225 = vld [vmem:[#allocation3 + $0xb4] sm:$0xf]
    %v226 = vld [vmem:[#allocation3 + $0xb8] sm:$0xf]
    %v227 = vld [vmem:[#allocation3 + $0xbc] sm:$0xf]
    %v228 = vld [vmem:[#allocation3 + $0xc0] sm:$0xf]
    %v229 = vld [vmem:[#allocation3 + $0xc4] sm:$0xf]
    %v230 = vld [vmem:[#allocation3 + $0xc8] sm:$0xf]
    %v231 = vld [vmem:[#allocation3 + $0xcc] sm:$0xf]
    %v232 = vld [vmem:[#allocation3 + $0xd0] sm:$0xf]
    %v233 = vld [vmem:[#allocation3 + $0xd4] sm:$0xf]
    %v234 = vld [vmem:[#allocation3 + $0xd8] sm:$0xf]
    %v235 = vld [vmem:[#allocation3 + $0xdc] sm:$0xf]
    %v236 = vld [vmem:[#allocation3 + $0xe0] sm:$0xf]
    %v237 = vld [vmem:[#allocation3 + $0xe4] sm:$0xf]
    %v238 = vld [vmem:[#allocation3 + $0xe8] sm:$0xf]
    %v239 = vld [vmem:[#allocation3 + $0xec] sm:$0xf]
    %v240 = vld [vmem:[#allocation3 + $0xf0] sm:$0xf]
    %v241 = vld [vmem:[#allocation3 + $0xf4] sm:$0xf]
    %v242 = vld [vmem:[#allocation3 + $0xf8] sm:$0xf]
    %v243 = vld [vmem:[#allocation3 + $0xfc] sm:$0xf]
    %v244 = vld [vmem:[#allocation6] sm:$0xf]
    %v245 = vld [vmem:[#allocation6 + $0x4] sm:$0xf]
    %v246 = vld [vmem:[#allocation6 + $0x8] sm:$0xf]
    %v247 = vld [vmem:[#allocation6 + $0xc] sm:$0xf]
    %v248 = vld [vmem:[#allocation6 + $0x10] sm:$0xf]
    %v249 = vld [vmem:[#allocation6 + $0x14] sm:$0xf]
    %v250 = vld [vmem:[#allocation6 + $0x18] sm:$0xf]
    %v251 = vld [vmem:[#allocation6 + $0x1c] sm:$0xf]
    %v252 = vld [vmem:[#allocation6 + $0x20] sm:$0xf]
    %v253 = vld [vmem:[#allocation6 + $0x24] sm:$0xf]
    %v254 = vld [vmem:[#allocation6 + $0x28] sm:$0xf]
    %v255 = vld [vmem:[#allocation6 + $0x2c] sm:$0xf]
    %v256 = vld [vmem:[#allocation6 + $0x30] sm:$0xf]
    %v257 = vld [vmem:[#allocation6 + $0x34] sm:$0xf]
    %v258 = vld [vmem:[#allocation6 + $0x38] sm:$0xf]
    %v259 = vld [vmem:[#allocation6 + $0x3c] sm:$0xf]
    %v324 = vunpack.c.l.b16 %v180
    %v325 = vunpack.c.l.b16 %v181
    %v326 = vunpack.c.l.b16 %v182
    %v327 = vunpack.c.l.b16 %v183
    %v328 = vunpack.c.l.b16 %v184
    %v329 = vunpack.c.l.b16 %v185
    %v330 = vunpack.c.l.b16 %v186
    %v331 = vunpack.c.l.b16 %v187
    %v332 = vunpack.c.l.b16 %v188
    %v333 = vunpack.c.l.b16 %v189
    %v334 = vunpack.c.l.b16 %v190
    %v335 = vunpack.c.l.b16 %v191
    %v336 = vunpack.c.l.b16 %v192
    %v337 = vunpack.c.l.b16 %v193
    %v338 = vunpack.c.l.b16 %v194
    %v339 = vunpack.c.l.b16 %v195
    %v340 = vunpack.c.l.b16 %v196
    %v341 = vunpack.c.l.b16 %v197
    %v342 = vunpack.c.l.b16 %v198
    %v343 = vunpack.c.l.b16 %v199
    %v344 = vunpack.c.l.b16 %v200
    %v345 = vunpack.c.l.b16 %v201
    %v346 = vunpack.c.l.b16 %v202
    %v347 = vunpack.c.l.b16 %v203
    %v348 = vunpack.c.l.b16 %v204
    %v349 = vunpack.c.l.b16 %v205
    %v350 = vunpack.c.l.b16 %v206
    %v351 = vunpack.c.l.b16 %v207
    %v352 = vunpack.c.l.b16 %v208
    %v353 = vunpack.c.l.b16 %v209
    %v354 = vunpack.c.l.b16 %v210
    %v355 = vunpack.c.l.b16 %v211
    %v356 = vunpack.c.l.b16 %v212
    %v357 = vunpack.c.l.b16 %v213
    %v358 = vunpack.c.l.b16 %v214
    %v359 = vunpack.c.l.b16 %v215
    %v360 = vunpack.c.l.b16 %v216
    %v361 = vunpack.c.l.b16 %v217
    %v362 = vunpack.c.l.b16 %v218
    %v363 = vunpack.c.l.b16 %v219
    %v364 = vunpack.c.l.b16 %v220
    %v365 = vunpack.c.l.b16 %v221
    %v366 = vunpack.c.l.b16 %v222
    %v367 = vunpack.c.l.b16 %v223
    %v368 = vunpack.c.l.b16 %v224
    %v369 = vunpack.c.l.b16 %v225
    %v370 = vunpack.c.l.b16 %v226
    %v371 = vunpack.c.l.b16 %v227
    %v372 = vunpack.c.l.b16 %v228
    %v373 = vunpack.c.l.b16 %v229
    %v374 = vunpack.c.l.b16 %v230
    %v375 = vunpack.c.l.b16 %v231
    %v376 = vunpack.c.l.b16 %v232
    %v377 = vunpack.c.l.b16 %v233
    %v378 = vunpack.c.l.b16 %v234
    %v379 = vunpack.c.l.b16 %v235
    %v380 = vunpack.c.l.b16 %v236
    %v381 = vunpack.c.l.b16 %v237
    %v382 = vunpack.c.l.b16 %v238
    %v383 = vunpack.c.l.b16 %v239
    %v384 = vunpack.c.l.b16 %v240
    %v385 = vunpack.c.l.b16 %v241
    %v386 = vunpack.c.l.b16 %v242
    %v387 = vunpack.c.l.b16 %v243
    %v388 = vpack.c.b16 %v325, %v324
    %v389 = vpack.c.b16 %v327, %v326
    %v390 = vpack.c.b16 %v329, %v328
    %v391 = vpack.c.b16 %v331, %v330
    %v392 = vpack.c.b16 %v333, %v332
    %v393 = vpack.c.b16 %v335, %v334
    %v394 = vpack.c.b16 %v337, %v336
    %v395 = vpack.c.b16 %v339, %v338
    %v396 = vpack.c.b16 %v341, %v340
    %v397 = vpack.c.b16 %v343, %v342
    %v398 = vpack.c.b16 %v345, %v344
    %v399 = vpack.c.b16 %v347, %v346
    %v400 = vpack.c.b16 %v349, %v348
    %v401 = vpack.c.b16 %v351, %v350
    %v402 = vpack.c.b16 %v353, %v352
    %v403 = vpack.c.b16 %v355, %v354
    %v404 = vpack.c.b16 %v357, %v356
    %v405 = vpack.c.b16 %v359, %v358
    %v406 = vpack.c.b16 %v361, %v360
    %v407 = vpack.c.b16 %v363, %v362
    %v408 = vpack.c.b16 %v365, %v364
    %v409 = vpack.c.b16 %v367, %v366
    %v410 = vpack.c.b16 %v369, %v368
    %v411 = vpack.c.b16 %v371, %v370
    %v412 = vpack.c.b16 %v373, %v372
    %v413 = vpack.c.b16 %v375, %v374
    %v414 = vpack.c.b16 %v377, %v376
    %v415 = vpack.c.b16 %v379, %v378
    %v416 = vpack.c.b16 %v381, %v380
    %v417 = vpack.c.b16 %v383, %v382
    %v418 = vpack.c.b16 %v385, %v384
    %v419 = vpack.c.b16 %v387, %v386
    %v468 = vunpack.c.l.b16 %v244
    %v469 = vunpack.c.l.b16 %v245
    %v470 = vunpack.c.l.b16 %v246
    %v471 = vunpack.c.l.b16 %v247
    %v472 = vunpack.c.l.b16 %v248
    %v473 = vunpack.c.l.b16 %v249
    %v474 = vunpack.c.l.b16 %v250
    %v475 = vunpack.c.l.b16 %v251
    %v476 = vunpack.c.l.b16 %v252
    %v477 = vunpack.c.l.b16 %v253
    %v478 = vunpack.c.l.b16 %v254
    %v479 = vunpack.c.l.b16 %v255
    %v480 = vunpack.c.l.b16 %v256
    %v481 = vunpack.c.l.b16 %v257
    %v482 = vunpack.c.l.b16 %v258
    %v483 = vunpack.c.l.b16 %v259
    %v484 = vpack.c.b16 %v469, %v468
    %v485 = vpack.c.b16 %v471, %v470
    %v486 = vpack.c.b16 %v473, %v472
    %v487 = vpack.c.b16 %v475, %v474
    %v488 = vpack.c.b16 %v477, %v476
    %v489 = vpack.c.b16 %v479, %v478
    %v490 = vpack.c.b16 %v481, %v480
    %v491 = vpack.c.b16 %v483, %v482
    %500 = vmatpush.bf16.msra.mxu0 %v491
    %501 = vmatpush.bf16.msra.mxu0 %v490
    %502 = vmatpush.bf16.msra.mxu0 %v489
    %503 = vmatpush.bf16.msra.mxu0 %v488
    %504 = vmatpush.bf16.msra.mxu0 %v487
    %505 = vmatpush.bf16.msra.mxu0 %v486
    %506 = vmatpush.bf16.msra.mxu0 %v485
    %507 = vmatpush.bf16.msra.mxu0 %v484
    %508 = vmatmul.bf16.gmra.mxu0 %v388
    %v509 = vpop.f32.mrf.mxu0
    %v510 = vadd.f32 0.0, %v509
    %v511 = vpop.f32.mrf.mxu0
    %v512 = vadd.f32 0.0, %v511
    %513 = vmatmul.bf16.gmra.mxu0 %v389
    %v514 = vpop.f32.mrf.mxu0
    %v515 = vadd.f32 0.0, %v514
    %v516 = vpop.f32.mrf.mxu0
    %v517 = vadd.f32 0.0, %v516
    %518 = vmatmul.bf16.gmra.mxu0 %v390
    %v519 = vpop.f32.mrf.mxu0
    %v520 = vadd.f32 0.0, %v519
    %v521 = vpop.f32.mrf.mxu0
    %v522 = vadd.f32 0.0, %v521
    %523 = vmatmul.bf16.gmra.mxu0 %v391
    %v524 = vpop.f32.mrf.mxu0
    %v525 = vadd.f32 0.0, %v524
    %v526 = vpop.f32.mrf.mxu0
    %v527 = vadd.f32 0.0, %v526
    %528 = vmatmul.bf16.gmra.mxu0 %v392
    %v529 = vpop.f32.mrf.mxu0
    %v530 = vadd.f32 0.0, %v529
    %v531 = vpop.f32.mrf.mxu0
    %v532 = vadd.f32 0.0, %v531
    %533 = vmatmul.bf16.gmra.mxu0 %v393
    %v534 = vpop.f32.mrf.mxu0
    %v535 = vadd.f32 0.0, %v534
    %v536 = vpop.f32.mrf.mxu0
    %v537 = vadd.f32 0.0, %v536
    %538 = vmatmul.bf16.gmra.mxu0 %v394
    %v539 = vpop.f32.mrf.mxu0
    %v540 = vadd.f32 0.0, %v539
    %v541 = vpop.f32.mrf.mxu0
    %v542 = vadd.f32 0.0, %v541
    %543 = vmatmul.bf16.gmra.mxu0 %v395
    %v544 = vpop.f32.mrf.mxu0
    %v545 = vadd.f32 0.0, %v544
    %v546 = vpop.f32.mrf.mxu0
    %v547 = vadd.f32 0.0, %v546
    %548 = vmatmul.bf16.gmra.mxu0 %v396
    %v549 = vpop.f32.mrf.mxu0
    %v550 = vadd.f32 0.0, %v549
    %v551 = vpop.f32.mrf.mxu0
    %v552 = vadd.f32 0.0, %v551
    %553 = vmatmul.bf16.gmra.mxu0 %v397
    %v554 = vpop.f32.mrf.mxu0
    %v555 = vadd.f32 0.0, %v554
    %v556 = vpop.f32.mrf.mxu0
    %v557 = vadd.f32 0.0, %v556
    %558 = vmatmul.bf16.gmra.mxu0 %v398
    %v559 = vpop.f32.mrf.mxu0
    %v560 = vadd.f32 0.0, %v559
    %v561 = vpop.f32.mrf.mxu0
    %v562 = vadd.f32 0.0, %v561
    %563 = vmatmul.bf16.gmra.mxu0 %v399
    %v564 = vpop.f32.mrf.mxu0
    %v565 = vadd.f32 0.0, %v564
    %v566 = vpop.f32.mrf.mxu0
    %v567 = vadd.f32 0.0, %v566
    %568 = vmatmul.bf16.gmra.mxu0 %v400
    %v569 = vpop.f32.mrf.mxu0
    %v570 = vadd.f32 0.0, %v569
    %v571 = vpop.f32.mrf.mxu0
    %v572 = vadd.f32 0.0, %v571
    %573 = vmatmul.bf16.gmra.mxu0 %v401
    %v574 = vpop.f32.mrf.mxu0
    %v575 = vadd.f32 0.0, %v574
    %v576 = vpop.f32.mrf.mxu0
    %v577 = vadd.f32 0.0, %v576
    %578 = vmatmul.bf16.gmra.mxu0 %v402
    %v579 = vpop.f32.mrf.mxu0
    %v580 = vadd.f32 0.0, %v579
    %v581 = vpop.f32.mrf.mxu0
    %v582 = vadd.f32 0.0, %v581
    %583 = vmatmul.bf16.gmra.mxu0 %v403
    %v584 = vpop.f32.mrf.mxu0
    %v585 = vadd.f32 0.0, %v584
    %v586 = vpop.f32.mrf.mxu0
    %v587 = vadd.f32 0.0, %v586
    %588 = vmatmul.bf16.gmra.mxu0 %v404
    %v589 = vpop.f32.mrf.mxu0
    %v590 = vadd.f32 0.0, %v589
    %v591 = vpop.f32.mrf.mxu0
    %v592 = vadd.f32 0.0, %v591
    %593 = vmatmul.bf16.gmra.mxu0 %v405
    %v594 = vpop.f32.mrf.mxu0
    %v595 = vadd.f32 0.0, %v594
    %v596 = vpop.f32.mrf.mxu0
    %v597 = vadd.f32 0.0, %v596
    %598 = vmatmul.bf16.gmra.mxu0 %v406
    %v599 = vpop.f32.mrf.mxu0
    %v600 = vadd.f32 0.0, %v599
    %v601 = vpop.f32.mrf.mxu0
    %v602 = vadd.f32 0.0, %v601
    %603 = vmatmul.bf16.gmra.mxu0 %v407
    %v604 = vpop.f32.mrf.mxu0
    %v605 = vadd.f32 0.0, %v604
    %v606 = vpop.f32.mrf.mxu0
    %v607 = vadd.f32 0.0, %v606
    %608 = vmatmul.bf16.gmra.mxu0 %v408
    %v609 = vpop.f32.mrf.mxu0
    %v610 = vadd.f32 0.0, %v609
    %v611 = vpop.f32.mrf.mxu0
    %v612 = vadd.f32 0.0, %v611
    %613 = vmatmul.bf16.gmra.mxu0 %v409
    %v614 = vpop.f32.mrf.mxu0
    %v615 = vadd.f32 0.0, %v614
    %v616 = vpop.f32.mrf.mxu0
    %v617 = vadd.f32 0.0, %v616
    %618 = vmatmul.bf16.gmra.mxu0 %v410
    %v619 = vpop.f32.mrf.mxu0
    %v620 = vadd.f32 0.0, %v619
    %v621 = vpop.f32.mrf.mxu0
    %v622 = vadd.f32 0.0, %v621
    %623 = vmatmul.bf16.gmra.mxu0 %v411
    %v624 = vpop.f32.mrf.mxu0
    %v625 = vadd.f32 0.0, %v624
    %v626 = vpop.f32.mrf.mxu0
    %v627 = vadd.f32 0.0, %v626
    %628 = vmatmul.bf16.gmra.mxu0 %v412
    %v629 = vpop.f32.mrf.mxu0
    %v630 = vadd.f32 0.0, %v629
    %v631 = vpop.f32.mrf.mxu0
    %v632 = vadd.f32 0.0, %v631
    %633 = vmatmul.bf16.gmra.mxu0 %v413
    %v634 = vpop.f32.mrf.mxu0
    %v635 = vadd.f32 0.0, %v634
    %v636 = vpop.f32.mrf.mxu0
    %v637 = vadd.f32 0.0, %v636
    %638 = vmatmul.bf16.gmra.mxu0 %v414
    %v639 = vpop.f32.mrf.mxu0
    %v640 = vadd.f32 0.0, %v639
    %v641 = vpop.f32.mrf.mxu0
    %v642 = vadd.f32 0.0, %v641
    %643 = vmatmul.bf16.gmra.mxu0 %v415
    %v644 = vpop.f32.mrf.mxu0
    %v645 = vadd.f32 0.0, %v644
    %v646 = vpop.f32.mrf.mxu0
    %v647 = vadd.f32 0.0, %v646
    %648 = vmatmul.bf16.gmra.mxu0 %v416
    %v649 = vpop.f32.mrf.mxu0
    %v650 = vadd.f32 0.0, %v649
    %v651 = vpop.f32.mrf.mxu0
    %v652 = vadd.f32 0.0, %v651
    %653 = vmatmul.bf16.gmra.mxu0 %v417
    %v654 = vpop.f32.mrf.mxu0
    %v655 = vadd.f32 0.0, %v654
    %v656 = vpop.f32.mrf.mxu0
    %v657 = vadd.f32 0.0, %v656
    %658 = vmatmul.bf16.gmra.mxu0 %v418
    %v659 = vpop.f32.mrf.mxu0
    %v660 = vadd.f32 0.0, %v659
    %v661 = vpop.f32.mrf.mxu0
    %v662 = vadd.f32 0.0, %v661
    %663 = vmatmul.bf16.gmra.mxu0 %v419
    %v664 = vpop.f32.mrf.mxu0
    %v665 = vadd.f32 0.0, %v664
    %v666 = vpop.f32.mrf.mxu0
    %v667 = vadd.f32 0.0, %v666
    %668 = vdwg.mxu0
    %v669 = vadd.f32 %v116, %v510
    %v670 = vadd.f32 %v117, %v512
    %v671 = vadd.f32 %v118, %v515
    %v672 = vadd.f32 %v119, %v517
    %v673 = vadd.f32 %v120, %v520
    %v674 = vadd.f32 %v121, %v522
    %v675 = vadd.f32 %v122, %v525
    %v676 = vadd.f32 %v123, %v527
    %v677 = vadd.f32 %v124, %v530
    %v678 = vadd.f32 %v125, %v532
    %v679 = vadd.f32 %v126, %v535
    %v680 = vadd.f32 %v127, %v537
    %v681 = vadd.f32 %v128, %v540
    %v682 = vadd.f32 %v129, %v542
    %v683 = vadd.f32 %v130, %v545
    %v684 = vadd.f32 %v131, %v547
    %v685 = vadd.f32 %v132, %v550
    %v686 = vadd.f32 %v133, %v552
    %v687 = vadd.f32 %v134, %v555
    %v688 = vadd.f32 %v135, %v557
    %v689 = vadd.f32 %v136, %v560
    %v690 = vadd.f32 %v137, %v562
    %v691 = vadd.f32 %v138, %v565
    %v692 = vadd.f32 %v139, %v567
    %v693 = vadd.f32 %v140, %v570
    %v694 = vadd.f32 %v141, %v572
    %v695 = vadd.f32 %v142, %v575
    %v696 = vadd.f32 %v143, %v577
    %v697 = vadd.f32 %v144, %v580
    %v698 = vadd.f32 %v145, %v582
    %v699 = vadd.f32 %v146, %v585
    %v700 = vadd.f32 %v147, %v587
    %v701 = vadd.f32 %v148, %v590
    %v702 = vadd.f32 %v149, %v592
    %v703 = vadd.f32 %v150, %v595
    %v704 = vadd.f32 %v151, %v597
    %v705 = vadd.f32 %v152, %v600
    %v706 = vadd.f32 %v153, %v602
    %v707 = vadd.f32 %v154, %v605
    %v708 = vadd.f32 %v155, %v607
    %v709 = vadd.f32 %v156, %v610
    %v710 = vadd.f32 %v157, %v612
    %v711 = vadd.f32 %v158, %v615
    %v712 = vadd.f32 %v159, %v617
    %v713 = vadd.f32 %v160, %v620
    %v714 = vadd.f32 %v161, %v622
    %v715 = vadd.f32 %v162, %v625
    %v716 = vadd.f32 %v163, %v627
    %v717 = vadd.f32 %v164, %v630
    %v718 = vadd.f32 %v165, %v632
    %v719 = vadd.f32 %v166, %v635
    %v720 = vadd.f32 %v167, %v637
    %v721 = vadd.f32 %v168, %v640
    %v722 = vadd.f32 %v169, %v642
    %v723 = vadd.f32 %v170, %v645
    %v724 = vadd.f32 %v171, %v647
    %v725 = vadd.f32 %v172, %v650
    %v726 = vadd.f32 %v173, %v652
    %v727 = vadd.f32 %v174, %v655
    %v728 = vadd.f32 %v175, %v657
    %v729 = vadd.f32 %v176, %v660
    %v730 = vadd.f32 %v177, %v662
    %v731 = vadd.f32 %v178, %v665
    %v732 = vadd.f32 %v179, %v667
    %733 = vst [vmem:[#allocation2] sm:$0xff] %v669
    %734 = vst [vmem:[#allocation2 + $0x8] sm:$0xff] %v670
    %735 = vst [vmem:[#allocation2 + $0x10] sm:$0xff] %v671
    %736 = vst [vmem:[#allocation2 + $0x18] sm:$0xff] %v672
    %737 = vst [vmem:[#allocation2 + $0x20] sm:$0xff] %v673
    %738 = vst [vmem:[#allocation2 + $0x28] sm:$0xff] %v674
    %739 = vst [vmem:[#allocation2 + $0x30] sm:$0xff] %v675
    %740 = vst [vmem:[#allocation2 + $0x38] sm:$0xff] %v676
    %741 = vst [vmem:[#allocation2 + $0x40] sm:$0xff] %v677
    %742 = vst [vmem:[#allocation2 + $0x48] sm:$0xff] %v678
    %743 = vst [vmem:[#allocation2 + $0x50] sm:$0xff] %v679
    %744 = vst [vmem:[#allocation2 + $0x58] sm:$0xff] %v680
    %745 = vst [vmem:[#allocation2 + $0x60] sm:$0xff] %v681
    %746 = vst [vmem:[#allocation2 + $0x68] sm:$0xff] %v682
    %747 = vst [vmem:[#allocation2 + $0x70] sm:$0xff] %v683
    %748 = vst [vmem:[#allocation2 + $0x78] sm:$0xff] %v684
    %749 = vst [vmem:[#allocation2 + $0x80] sm:$0xff] %v685
    %750 = vst [vmem:[#allocation2 + $0x88] sm:$0xff] %v686
    %751 = vst [vmem:[#allocation2 + $0x90] sm:$0xff] %v687
    %752 = vst [vmem:[#allocation2 + $0x98] sm:$0xff] %v688
    %753 = vst [vmem:[#allocation2 + $0xa0] sm:$0xff] %v689
    %754 = vst [vmem:[#allocation2 + $0xa8] sm:$0xff] %v690
    %755 = vst [vmem:[#allocation2 + $0xb0] sm:$0xff] %v691
    %756 = vst [vmem:[#allocation2 + $0xb8] sm:$0xff] %v692
    %757 = vst [vmem:[#allocation2 + $0xc0] sm:$0xff] %v693
    %758 = vst [vmem:[#allocation2 + $0xc8] sm:$0xff] %v694
    %759 = vst [vmem:[#allocation2 + $0xd0] sm:$0xff] %v695
    %760 = vst [vmem:[#allocation2 + $0xd8] sm:$0xff] %v696
    %761 = vst [vmem:[#allocation2 + $0xe0] sm:$0xff] %v697
    %762 = vst [vmem:[#allocation2 + $0xe8] sm:$0xff] %v698
    %763 = vst [vmem:[#allocation2 + $0xf0] sm:$0xff] %v699
    %764 = vst [vmem:[#allocation2 + $0xf8] sm:$0xff] %v700
    %765 = vst [vmem:[#allocation2 + $0x100] sm:$0xff] %v701
    %766 = vst [vmem:[#allocation2 + $0x108] sm:$0xff] %v702
    %767 = vst [vmem:[#allocation2 + $0x110] sm:$0xff] %v703
    %768 = vst [vmem:[#allocation2 + $0x118] sm:$0xff] %v704
    %769 = vst [vmem:[#allocation2 + $0x120] sm:$0xff] %v705
    %770 = vst [vmem:[#allocation2 + $0x128] sm:$0xff] %v706
    %771 = vst [vmem:[#allocation2 + $0x130] sm:$0xff] %v707
    %772 = vst [vmem:[#allocation2 + $0x138] sm:$0xff] %v708
    %773 = vst [vmem:[#allocation2 + $0x140] sm:$0xff] %v709
    %774 = vst [vmem:[#allocation2 + $0x148] sm:$0xff] %v710
    %775 = vst [vmem:[#allocation2 + $0x150] sm:$0xff] %v711
    %776 = vst [vmem:[#allocation2 + $0x158] sm:$0xff] %v712
    %777 = vst [vmem:[#allocation2 + $0x160] sm:$0xff] %v713
    %778 = vst [vmem:[#allocation2 + $0x168] sm:$0xff] %v714
    %779 = vst [vmem:[#allocation2 + $0x170] sm:$0xff] %v715
    %780 = vst [vmem:[#allocation2 + $0x178] sm:$0xff] %v716
    %781 = vst [vmem:[#allocation2 + $0x180] sm:$0xff] %v717
    %782 = vst [vmem:[#allocation2 + $0x188] sm:$0xff] %v718
    %783 = vst [vmem:[#allocation2 + $0x190] sm:$0xff] %v719
    %784 = vst [vmem:[#allocation2 + $0x198] sm:$0xff] %v720
    %785 = vst [vmem:[#allocation2 + $0x1a0] sm:$0xff] %v721
    %786 = vst [vmem:[#allocation2 + $0x1a8] sm:$0xff] %v722
    %787 = vst [vmem:[#allocation2 + $0x1b0] sm:$0xff] %v723
    %788 = vst [vmem:[#allocation2 + $0x1b8] sm:$0xff] %v724
    %789 = vst [vmem:[#allocation2 + $0x1c0] sm:$0xff] %v725
    %790 = vst [vmem:[#allocation2 + $0x1c8] sm:$0xff] %v726
    %791 = vst [vmem:[#allocation2 + $0x1d0] sm:$0xff] %v727
    %792 = vst [vmem:[#allocation2 + $0x1d8] sm:$0xff] %v728
    %793 = vst [vmem:[#allocation2 + $0x1e0] sm:$0xff] %v729
    %794 = vst [vmem:[#allocation2 + $0x1e8] sm:$0xff] %v730
    %795 = vst [vmem:[#allocation2 + $0x1f0] sm:$0xff] %v731
    %796 = vst [vmem:[#allocation2 + $0x1f8] sm:$0xff] %v732
    // Predicated region
    $region22: #{tpu_custom_call.1} parent=1 // pred_check
      %p797 = pneg %p48
    $region23: #{tpu_custom_call.1} parent=1 // pred_check_branch
      %799 = sbr.rel (%p797) target = $region25
    $region24: #{tpu_custom_call.1} parent=1 // pred_region
      %v800 = vld [vmem:[#allocation2] sm:$0xff]
      %v801 = vld [vmem:[#allocation2 + $0x8] sm:$0xff]
      %v802 = vld [vmem:[#allocation2 + $0x10] sm:$0xff]
      %v803 = vld [vmem:[#allocation2 + $0x18] sm:$0xff]
      %v804 = vld [vmem:[#allocation2 + $0x20] sm:$0xff]
      %v805 = vld [vmem:[#allocation2 + $0x28] sm:$0xff]
      %v806 = vld [vmem:[#allocation2 + $0x30] sm:$0xff]
      %v807 = vld [vmem:[#allocation2 + $0x38] sm:$0xff]
      %v808 = vld [vmem:[#allocation2 + $0x40] sm:$0xff]
      %v809 = vld [vmem:[#allocation2 + $0x48] sm:$0xff]
      %v810 = vld [vmem:[#allocation2 + $0x50] sm:$0xff]
      %v811 = vld [vmem:[#allocation2 + $0x58] sm:$0xff]
      %v812 = vld [vmem:[#allocation2 + $0x60] sm:$0xff]
      %v813 = vld [vmem:[#allocation2 + $0x68] sm:$0xff]
      %v814 = vld [vmem:[#allocation2 + $0x70] sm:$0xff]
      %v815 = vld [vmem:[#allocation2 + $0x78] sm:$0xff]
      %v816 = vld [vmem:[#allocation2 + $0x80] sm:$0xff]
      %v817 = vld [vmem:[#allocation2 + $0x88] sm:$0xff]
      %v818 = vld [vmem:[#allocation2 + $0x90] sm:$0xff]
      %v819 = vld [vmem:[#allocation2 + $0x98] sm:$0xff]
      %v820 = vld [vmem:[#allocation2 + $0xa0] sm:$0xff]
      %v821 = vld [vmem:[#allocation2 + $0xa8] sm:$0xff]
      %v822 = vld [vmem:[#allocation2 + $0xb0] sm:$0xff]
      %v823 = vld [vmem:[#allocation2 + $0xb8] sm:$0xff]
      %v824 = vld [vmem:[#allocation2 + $0xc0] sm:$0xff]
      %v825 = vld [vmem:[#allocation2 + $0xc8] sm:$0xff]
      %v826 = vld [vmem:[#allocation2 + $0xd0] sm:$0xff]
      %v827 = vld [vmem:[#allocation2 + $0xd8] sm:$0xff]
      %v828 = vld [vmem:[#allocation2 + $0xe0] sm:$0xff]
      %v829 = vld [vmem:[#allocation2 + $0xe8] sm:$0xff]
      %v830 = vld [vmem:[#allocation2 + $0xf0] sm:$0xff]
      %v831 = vld [vmem:[#allocation2 + $0xf8] sm:$0xff]
      %v832 = vld [vmem:[#allocation2 + $0x100] sm:$0xff]
      %v833 = vld [vmem:[#allocation2 + $0x108] sm:$0xff]
      %v834 = vld [vmem:[#allocation2 + $0x110] sm:$0xff]
      %v835 = vld [vmem:[#allocation2 + $0x118] sm:$0xff]
      %v836 = vld [vmem:[#allocation2 + $0x120] sm:$0xff]
      %v837 = vld [vmem:[#allocation2 + $0x128] sm:$0xff]
      %v838 = vld [vmem:[#allocation2 + $0x130] sm:$0xff]
      %v839 = vld [vmem:[#allocation2 + $0x138] sm:$0xff]
      %v840 = vld [vmem:[#allocation2 + $0x140] sm:$0xff]
      %v841 = vld [vmem:[#allocation2 + $0x148] sm:$0xff]
      %v842 = vld [vmem:[#allocation2 + $0x150] sm:$0xff]
      %v843 = vld [vmem:[#allocation2 + $0x158] sm:$0xff]
      %v844 = vld [vmem:[#allocation2 + $0x160] sm:$0xff]
      %v845 = vld [vmem:[#allocation2 + $0x168] sm:$0xff]
      %v846 = vld [vmem:[#allocation2 + $0x170] sm:$0xff]
      %v847 = vld [vmem:[#allocation2 + $0x178] sm:$0xff]
      %v848 = vld [vmem:[#allocation2 + $0x180] sm:$0xff]
      %v849 = vld [vmem:[#allocation2 + $0x188] sm:$0xff]
      %v850 = vld [vmem:[#allocation2 + $0x190] sm:$0xff]
      %v851 = vld [vmem:[#allocation2 + $0x198] sm:$0xff]
      %v852 = vld [vmem:[#allocation2 + $0x1a0] sm:$0xff]
      %v853 = vld [vmem:[#allocation2 + $0x1a8] sm:$0xff]
      %v854 = vld [vmem:[#allocation2 + $0x1b0] sm:$0xff]
      %v855 = vld [vmem:[#allocation2 + $0x1b8] sm:$0xff]
      %v856 = vld [vmem:[#allocation2 + $0x1c0] sm:$0xff]
      %v857 = vld [vmem:[#allocation2 + $0x1c8] sm:$0xff]
      %v858 = vld [vmem:[#allocation2 + $0x1d0] sm:$0xff]
      %v859 = vld [vmem:[#allocation2 + $0x1d8] sm:$0xff]
      %v860 = vld [vmem:[#allocation2 + $0x1e0] sm:$0xff]
      %v861 = vld [vmem:[#allocation2 + $0x1e8] sm:$0xff]
      %v862 = vld [vmem:[#allocation2 + $0x1f0] sm:$0xff]
      %v863 = vld [vmem:[#allocation2 + $0x1f8] sm:$0xff]
      %v864 = vpack.c.bf16 %v800, %v800
      %v865 = vpack.c.bf16 %v801, %v801
      %v866 = vpack.c.bf16 %v802, %v802
      %v867 = vpack.c.bf16 %v803, %v803
      %v868 = vpack.c.bf16 %v804, %v804
      %v869 = vpack.c.bf16 %v805, %v805
      %v870 = vpack.c.bf16 %v806, %v806
      %v871 = vpack.c.bf16 %v807, %v807
      %v872 = vpack.c.bf16 %v808, %v808
      %v873 = vpack.c.bf16 %v809, %v809
      %v874 = vpack.c.bf16 %v810, %v810
      %v875 = vpack.c.bf16 %v811, %v811
      %v876 = vpack.c.bf16 %v812, %v812
      %v877 = vpack.c.bf16 %v813, %v813
      %v878 = vpack.c.bf16 %v814, %v814
      %v879 = vpack.c.bf16 %v815, %v815
      %v880 = vpack.c.bf16 %v816, %v816
      %v881 = vpack.c.bf16 %v817, %v817
      %v882 = vpack.c.bf16 %v818, %v818
      %v883 = vpack.c.bf16 %v819, %v819
      %v884 = vpack.c.bf16 %v820, %v820
      %v885 = vpack.c.bf16 %v821, %v821
      %v886 = vpack.c.bf16 %v822, %v822
      %v887 = vpack.c.bf16 %v823, %v823
      %v888 = vpack.c.bf16 %v824, %v824
      %v889 = vpack.c.bf16 %v825, %v825
      %v890 = vpack.c.bf16 %v826, %v826
      %v891 = vpack.c.bf16 %v827, %v827
      %v892 = vpack.c.bf16 %v828, %v828
      %v893 = vpack.c.bf16 %v829, %v829
      %v894 = vpack.c.bf16 %v830, %v830
      %v895 = vpack.c.bf16 %v831, %v831
      %v896 = vpack.c.bf16 %v832, %v832
      %v897 = vpack.c.bf16 %v833, %v833
      %v898 = vpack.c.bf16 %v834, %v834
      %v899 = vpack.c.bf16 %v835, %v835
      %v900 = vpack.c.bf16 %v836, %v836
      %v901 = vpack.c.bf16 %v837, %v837
      %v902 = vpack.c.bf16 %v838, %v838
      %v903 = vpack.c.bf16 %v839, %v839
      %v904 = vpack.c.bf16 %v840, %v840
      %v905 = vpack.c.bf16 %v841, %v841
      %v906 = vpack.c.bf16 %v842, %v842
      %v907 = vpack.c.bf16 %v843, %v843
      %v908 = vpack.c.bf16 %v844, %v844
      %v909 = vpack.c.bf16 %v845, %v845
      %v910 = vpack.c.bf16 %v846, %v846
      %v911 = vpack.c.bf16 %v847, %v847
      %v912 = vpack.c.bf16 %v848, %v848
      %v913 = vpack.c.bf16 %v849, %v849
      %v914 = vpack.c.bf16 %v850, %v850
      %v915 = vpack.c.bf16 %v851, %v851
      %v916 = vpack.c.bf16 %v852, %v852
      %v917 = vpack.c.bf16 %v853, %v853
      %v918 = vpack.c.bf16 %v854, %v854
      %v919 = vpack.c.bf16 %v855, %v855
      %v920 = vpack.c.bf16 %v856, %v856
      %v921 = vpack.c.bf16 %v857, %v857
      %v922 = vpack.c.bf16 %v858, %v858
      %v923 = vpack.c.bf16 %v859, %v859
      %v924 = vpack.c.bf16 %v860, %v860
      %v925 = vpack.c.bf16 %v861, %v861
      %v926 = vpack.c.bf16 %v862, %v862
      %v927 = vpack.c.bf16 %v863, %v863
      %928 = vst [vmem:[#allocation8] sm:$0xf] %v864
      %929 = vst [vmem:[#allocation8 + $0x4] sm:$0xf] %v865
      %930 = vst [vmem:[#allocation8 + $0x8] sm:$0xf] %v866
      %931 = vst [vmem:[#allocation8 + $0xc] sm:$0xf] %v867
      %932 = vst [vmem:[#allocation8 + $0x10] sm:$0xf] %v868
      %933 = vst [vmem:[#allocation8 + $0x14] sm:$0xf] %v869
      %934 = vst [vmem:[#allocation8 + $0x18] sm:$0xf] %v870
      %935 = vst [vmem:[#allocation8 + $0x1c] sm:$0xf] %v871
      %936 = vst [vmem:[#allocation8 + $0x20] sm:$0xf] %v872
      %937 = vst [vmem:[#allocation8 + $0x24] sm:$0xf] %v873
      %938 = vst [vmem:[#allocation8 + $0x28] sm:$0xf] %v874
      %939 = vst [vmem:[#allocation8 + $0x2c] sm:$0xf] %v875
      %940 = vst [vmem:[#allocation8 + $0x30] sm:$0xf] %v876
      %941 = vst [vmem:[#allocation8 + $0x34] sm:$0xf] %v877
      %942 = vst [vmem:[#allocation8 + $0x38] sm:$0xf] %v878
      %943 = vst [vmem:[#allocation8 + $0x3c] sm:$0xf] %v879
      %944 = vst [vmem:[#allocation8 + $0x40] sm:$0xf] %v880
      %945 = vst [vmem:[#allocation8 + $0x44] sm:$0xf] %v881
      %946 = vst [vmem:[#allocation8 + $0x48] sm:$0xf] %v882
      %947 = vst [vmem:[#allocation8 + $0x4c] sm:$0xf] %v883
      %948 = vst [vmem:[#allocation8 + $0x50] sm:$0xf] %v884
      %949 = vst [vmem:[#allocation8 + $0x54] sm:$0xf] %v885
      %950 = vst [vmem:[#allocation8 + $0x58] sm:$0xf] %v886
      %951 = vst [vmem:[#allocation8 + $0x5c] sm:$0xf] %v887
      %952 = vst [vmem:[#allocation8 + $0x60] sm:$0xf] %v888
      %953 = vst [vmem:[#allocation8 + $0x64] sm:$0xf] %v889
      %954 = vst [vmem:[#allocation8 + $0x68] sm:$0xf] %v890
      %955 = vst [vmem:[#allocation8 + $0x6c] sm:$0xf] %v891
      %956 = vst [vmem:[#allocation8 + $0x70] sm:$0xf] %v892
      %957 = vst [vmem:[#allocation8 + $0x74] sm:$0xf] %v893
      %958 = vst [vmem:[#allocation8 + $0x78] sm:$0xf] %v894
      %959 = vst [vmem:[#allocation8 + $0x7c] sm:$0xf] %v895
      %960 = vst [vmem:[#allocation8 + $0x80] sm:$0xf] %v896
      %961 = vst [vmem:[#allocation8 + $0x84] sm:$0xf] %v897
      %962 = vst [vmem:[#allocation8 + $0x88] sm:$0xf] %v898
      %963 = vst [vmem:[#allocation8 + $0x8c] sm:$0xf] %v899
      %964 = vst [vmem:[#allocation8 + $0x90] sm:$0xf] %v900
      %965 = vst [vmem:[#allocation8 + $0x94] sm:$0xf] %v901
      %966 = vst [vmem:[#allocation8 + $0x98] sm:$0xf] %v902
      %967 = vst [vmem:[#allocation8 + $0x9c] sm:$0xf] %v903
      %968 = vst [vmem:[#allocation8 + $0xa0] sm:$0xf] %v904
      %969 = vst [vmem:[#allocation8 + $0xa4] sm:$0xf] %v905
      %970 = vst [vmem:[#allocation8 + $0xa8] sm:$0xf] %v906
      %971 = vst [vmem:[#allocation8 + $0xac] sm:$0xf] %v907
      %972 = vst [vmem:[#allocation8 + $0xb0] sm:$0xf] %v908
      %973 = vst [vmem:[#allocation8 + $0xb4] sm:$0xf] %v909
      %974 = vst [vmem:[#allocation8 + $0xb8] sm:$0xf] %v910
      %975 = vst [vmem:[#allocation8 + $0xbc] sm:$0xf] %v911
      %976 = vst [vmem:[#allocation8 + $0xc0] sm:$0xf] %v912
      %977 = vst [vmem:[#allocation8 + $0xc4] sm:$0xf] %v913
      %978 = vst [vmem:[#allocation8 + $0xc8] sm:$0xf] %v914
      %979 = vst [vmem:[#allocation8 + $0xcc] sm:$0xf] %v915
      %980 = vst [vmem:[#allocation8 + $0xd0] sm:$0xf] %v916
      %981 = vst [vmem:[#allocation8 + $0xd4] sm:$0xf] %v917
      %982 = vst [vmem:[#allocation8 + $0xd8] sm:$0xf] %v918
      %983 = vst [vmem:[#allocation8 + $0xdc] sm:$0xf] %v919
      %984 = vst [vmem:[#allocation8 + $0xe0] sm:$0xf] %v920
      %985 = vst [vmem:[#allocation8 + $0xe4] sm:$0xf] %v921
      %986 = vst [vmem:[#allocation8 + $0xe8] sm:$0xf] %v922
      %987 = vst [vmem:[#allocation8 + $0xec] sm:$0xf] %v923
      %988 = vst [vmem:[#allocation8 + $0xf0] sm:$0xf] %v924
      %989 = vst [vmem:[#allocation8 + $0xf4] sm:$0xf] %v925
      %990 = vst [vmem:[#allocation8 + $0xf8] sm:$0xf] %v926
      %991 = vst [vmem:[#allocation8 + $0xfc] sm:$0xf] %v927
      %v992 = vlaneseq
      %v993 = vshrl.u32 %v992, 7
      %v994 = vadd.s32 %v993, 8
      %v995 = vadd.s32 %v993, 16
      %v996 = vadd.s32 %v993, 24
      %v997 = vadd.s32 %v993, 32
      %v998 = vadd.s32 %v993, 40
      %v999 = vadd.s32 %v993, 48
      %v1000 = vadd.s32 %v993, 56
      %v1001 = vadd.s32 %v993, 64
      %v1002 = vadd.s32 %v993, 72
      %v1003 = vadd.s32 %v993, 80
      %v1004 = vadd.s32 %v993, 88
      %v1005 = vadd.s32 %v993, 96
      %v1006 = vadd.s32 %v993, 104
      %v1007 = vadd.s32 %v993, 112
      %v1008 = vadd.s32 %v993, 120
      %v1009 = vadd.s32 %v993, 128
      %v1010 = vadd.s32 %v993, 136
      %v1011 = vadd.s32 %v993, 144
      %v1012 = vadd.s32 %v993, 152
      %v1013 = vadd.s32 %v993, 160
      %v1014 = vadd.s32 %v993, 168
      %v1015 = vadd.s32 %v993, 176
      %v1016 = vadd.s32 %v993, 184
      %v1017 = vadd.s32 %v993, 192
      %v1018 = vadd.s32 %v993, 200
      %v1019 = vadd.s32 %v993, 208
      %v1020 = vadd.s32 %v993, 216
      %v1021 = vadd.s32 %v993, 224
      %v1022 = vadd.s32 %v993, 232
      %v1023 = vadd.s32 %v993, 240
      %v1024 = vadd.s32 %v993, 248
      %v1025 = vadd.s32 %v993, 256
      %v1026 = vadd.s32 %v993, 264
      %v1027 = vadd.s32 %v993, 272
      %v1028 = vadd.s32 %v993, 280
      %v1029 = vadd.s32 %v993, 288
      %v1030 = vadd.s32 %v993, 296
      %v1031 = vadd.s32 %v993, 304
      %v1032 = vadd.s32 %v993, 312
      %v1033 = vadd.s32 %v993, 320
      %v1034 = vadd.s32 %v993, 328
      %v1035 = vadd.s32 %v993, 336
      %v1036 = vadd.s32 %v993, 344
      %v1037 = vadd.s32 %v993, 352
      %v1038 = vadd.s32 %v993, 360
      %v1039 = vadd.s32 %v993, 368
      %v1040 = vadd.s32 %v993, 376
      %v1041 = vadd.s32 %v993, 384
      %v1042 = vadd.s32 %v993, 392
      %v1043 = vadd.s32 %v993, 400
      %v1044 = vadd.s32 %v993, 408
      %v1045 = vadd.s32 %v993, 416
      %v1046 = vadd.s32 %v993, 424
      %v1047 = vadd.s32 %v993, 432
      %v1048 = vadd.s32 %v993, 440
      %v1049 = vadd.s32 %v993, 448
      %v1050 = vadd.s32 %v993, 456
      %v1051 = vadd.s32 %v993, 464
      %v1052 = vadd.s32 %v993, 472
      %v1053 = vadd.s32 %v993, 480
      %v1054 = vadd.s32 %v993, 488
      %v1055 = vadd.s32 %v993, 496
      %v1056 = vadd.s32 %v993, 504
      %s1057 = smul.u32 0, 512
      %v1058 = vstv %s1057
      %v1059 = vadd.s32 %v993, %v1058
      %v1060 = vadd.s32 %v994, %v1058
      %v1061 = vadd.s32 %v995, %v1058
      %v1062 = vadd.s32 %v996, %v1058
      %v1063 = vadd.s32 %v997, %v1058
      %v1064 = vadd.s32 %v998, %v1058
      %v1065 = vadd.s32 %v999, %v1058
      %v1066 = vadd.s32 %v1000, %v1058
      %v1067 = vadd.s32 %v1001, %v1058
      %v1068 = vadd.s32 %v1002, %v1058
      %v1069 = vadd.s32 %v1003, %v1058
      %v1070 = vadd.s32 %v1004, %v1058
      %v1071 = vadd.s32 %v1005, %v1058
      %v1072 = vadd.s32 %v1006, %v1058
      %v1073 = vadd.s32 %v1007, %v1058
      %v1074 = vadd.s32 %v1008, %v1058
      %v1075 = vadd.s32 %v1009, %v1058
      %v1076 = vadd.s32 %v1010, %v1058
      %v1077 = vadd.s32 %v1011, %v1058
      %v1078 = vadd.s32 %v1012, %v1058
      %v1079 = vadd.s32 %v1013, %v1058
      %v1080 = vadd.s32 %v1014, %v1058
      %v1081 = vadd.s32 %v1015, %v1058
      %v1082 = vadd.s32 %v1016, %v1058
      %v1083 = vadd.s32 %v1017, %v1058
      %v1084 = vadd.s32 %v1018, %v1058
      %v1085 = vadd.s32 %v1019, %v1058
      %v1086 = vadd.s32 %v1020, %v1058
      %v1087 = vadd.s32 %v1021, %v1058
      %v1088 = vadd.s32 %v1022, %v1058
      %v1089 = vadd.s32 %v1023, %v1058
      %v1090 = vadd.s32 %v1024, %v1058
      %v1091 = vadd.s32 %v1025, %v1058
      %v1092 = vadd.s32 %v1026, %v1058
      %v1093 = vadd.s32 %v1027, %v1058
      %v1094 = vadd.s32 %v1028, %v1058
      %v1095 = vadd.s32 %v1029, %v1058
      %v1096 = vadd.s32 %v1030, %v1058
      %v1097 = vadd.s32 %v1031, %v1058
      %v1098 = vadd.s32 %v1032, %v1058
      %v1099 = vadd.s32 %v1033, %v1058
      %v1100 = vadd.s32 %v1034, %v1058
      %v1101 = vadd.s32 %v1035, %v1058
      %v1102 = vadd.s32 %v1036, %v1058
      %v1103 = vadd.s32 %v1037, %v1058
      %v1104 = vadd.s32 %v1038, %v1058
      %v1105 = vadd.s32 %v1039, %v1058
      %v1106 = vadd.s32 %v1040, %v1058
      %v1107 = vadd.s32 %v1041, %v1058
      %v1108 = vadd.s32 %v1042, %v1058
      %v1109 = vadd.s32 %v1043, %v1058
      %v1110 = vadd.s32 %v1044, %v1058
      %v1111 = vadd.s32 %v1045, %v1058
      %v1112 = vadd.s32 %v1046, %v1058
      %v1113 = vadd.s32 %v1047, %v1058
      %v1114 = vadd.s32 %v1048, %v1058
      %v1115 = vadd.s32 %v1049, %v1058
      %v1116 = vadd.s32 %v1050, %v1058
      %v1117 = vadd.s32 %v1051, %v1058
      %v1118 = vadd.s32 %v1052, %v1058
      %v1119 = vadd.s32 %v1053, %v1058
      %v1120 = vadd.s32 %v1054, %v1058
      %v1121 = vadd.s32 %v1055, %v1058
      %v1122 = vadd.s32 %v1056, %v1058
      %vm1123 = vcmp.lt.s32.totalorder %v1059, 512
      %vm1124 = vcmp.lt.s32.totalorder %v1060, 512
      %vm1125 = vcmp.lt.s32.totalorder %v1061, 512
      %vm1126 = vcmp.lt.s32.totalorder %v1062, 512
      %vm1127 = vcmp.lt.s32.totalorder %v1063, 512
      %vm1128 = vcmp.lt.s32.totalorder %v1064, 512
      %vm1129 = vcmp.lt.s32.totalorder %v1065, 512
      %vm1130 = vcmp.lt.s32.totalorder %v1066, 512
      %vm1131 = vcmp.lt.s32.totalorder %v1067, 512
      %vm1132 = vcmp.lt.s32.totalorder %v1068, 512
      %vm1133 = vcmp.lt.s32.totalorder %v1069, 512
      %vm1134 = vcmp.lt.s32.totalorder %v1070, 512
      %vm1135 = vcmp.lt.s32.totalorder %v1071, 512
      %vm1136 = vcmp.lt.s32.totalorder %v1072, 512
      %vm1137 = vcmp.lt.s32.totalorder %v1073, 512
      %vm1138 = vcmp.lt.s32.totalorder %v1074, 512
      %vm1139 = vcmp.lt.s32.totalorder %v1075, 512
      %vm1140 = vcmp.lt.s32.totalorder %v1076, 512
      %vm1141 = vcmp.lt.s32.totalorder %v1077, 512
      %vm1142 = vcmp.lt.s32.totalorder %v1078, 512
      %vm1143 = vcmp.lt.s32.totalorder %v1079, 512
      %vm1144 = vcmp.lt.s32.totalorder %v1080, 512
      %vm1145 = vcmp.lt.s32.totalorder %v1081, 512
      %vm1146 = vcmp.lt.s32.totalorder %v1082, 512
      %vm1147 = vcmp.lt.s32.totalorder %v1083, 512
      %vm1148 = vcmp.lt.s32.totalorder %v1084, 512
      %vm1149 = vcmp.lt.s32.totalorder %v1085, 512
      %vm1150 = vcmp.lt.s32.totalorder %v1086, 512
      %vm1151 = vcmp.lt.s32.totalorder %v1087, 512
      %vm1152 = vcmp.lt.s32.totalorder %v1088, 512
      %vm1153 = vcmp.lt.s32.totalorder %v1089, 512
      %vm1154 = vcmp.lt.s32.totalorder %v1090, 512
      %vm1155 = vcmp.lt.s32.totalorder %v1091, 512
      %vm1156 = vcmp.lt.s32.totalorder %v1092, 512
      %vm1157 = vcmp.lt.s32.totalorder %v1093, 512
      %vm1158 = vcmp.lt.s32.totalorder %v1094, 512
      %vm1159 = vcmp.lt.s32.totalorder %v1095, 512
      %vm1160 = vcmp.lt.s32.totalorder %v1096, 512
      %vm1161 = vcmp.lt.s32.totalorder %v1097, 512
      %vm1162 = vcmp.lt.s32.totalorder %v1098, 512
      %vm1163 = vcmp.lt.s32.totalorder %v1099, 512
      %vm1164 = vcmp.lt.s32.totalorder %v1100, 512
      %vm1165 = vcmp.lt.s32.totalorder %v1101, 512
      %vm1166 = vcmp.lt.s32.totalorder %v1102, 512
      %vm1167 = vcmp.lt.s32.totalorder %v1103, 512
      %vm1168 = vcmp.lt.s32.totalorder %v1104, 512
      %vm1169 = vcmp.lt.s32.totalorder %v1105, 512
      %vm1170 = vcmp.lt.s32.totalorder %v1106, 512
      %vm1171 = vcmp.lt.s32.totalorder %v1107, 512
      %vm1172 = vcmp.lt.s32.totalorder %v1108, 512
      %vm1173 = vcmp.lt.s32.totalorder %v1109, 512
      %vm1174 = vcmp.lt.s32.totalorder %v1110, 512
      %vm1175 = vcmp.lt.s32.totalorder %v1111, 512
      %vm1176 = vcmp.lt.s32.totalorder %v1112, 512
      %vm1177 = vcmp.lt.s32.totalorder %v1113, 512
      %vm1178 = vcmp.lt.s32.totalorder %v1114, 512
      %vm1179 = vcmp.lt.s32.totalorder %v1115, 512
      %vm1180 = vcmp.lt.s32.totalorder %v1116, 512
      %vm1181 = vcmp.lt.s32.totalorder %v1117, 512
      %vm1182 = vcmp.lt.s32.totalorder %v1118, 512
      %vm1183 = vcmp.lt.s32.totalorder %v1119, 512
      %vm1184 = vcmp.lt.s32.totalorder %v1120, 512
      %vm1185 = vcmp.lt.s32.totalorder %v1121, 512
      %vm1186 = vcmp.lt.s32.totalorder %v1122, 512
      %v1187 = vsel %vm1123, 1, 0
      %v1188 = vsel %vm1124, 1, 0
      %v1189 = vsel %vm1125, 1, 0
      %v1190 = vsel %vm1126, 1, 0
      %v1191 = vsel %vm1127, 1, 0
      %v1192 = vsel %vm1128, 1, 0
      %v1193 = vsel %vm1129, 1, 0
      %v1194 = vsel %vm1130, 1, 0
      %v1195 = vsel %vm1131, 1, 0
      %v1196 = vsel %vm1132, 1, 0
      %v1197 = vsel %vm1133, 1, 0
      %v1198 = vsel %vm1134, 1, 0
      %v1199 = vsel %vm1135, 1, 0
      %v1200 = vsel %vm1136, 1, 0
      %v1201 = vsel %vm1137, 1, 0
      %v1202 = vsel %vm1138, 1, 0
      %v1203 = vsel %vm1139, 1, 0
      %v1204 = vsel %vm1140, 1, 0
      %v1205 = vsel %vm1141, 1, 0
      %v1206 = vsel %vm1142, 1, 0
      %v1207 = vsel %vm1143, 1, 0
      %v1208 = vsel %vm1144, 1, 0
      %v1209 = vsel %vm1145, 1, 0
      %v1210 = vsel %vm1146, 1, 0
      %v1211 = vsel %vm1147, 1, 0
      %v1212 = vsel %vm1148, 1, 0
      %v1213 = vsel %vm1149, 1, 0
      %v1214 = vsel %vm1150, 1, 0
      %v1215 = vsel %vm1151, 1, 0
      %v1216 = vsel %vm1152, 1, 0
      %v1217 = vsel %vm1153, 1, 0
      %v1218 = vsel %vm1154, 1, 0
      %v1219 = vsel %vm1155, 1, 0
      %v1220 = vsel %vm1156, 1, 0
      %v1221 = vsel %vm1157, 1, 0
      %v1222 = vsel %vm1158, 1, 0
      %v1223 = vsel %vm1159, 1, 0
      %v1224 = vsel %vm1160, 1, 0
      %v1225 = vsel %vm1161, 1, 0
      %v1226 = vsel %vm1162, 1, 0
      %v1227 = vsel %vm1163, 1, 0
      %v1228 = vsel %vm1164, 1, 0
      %v1229 = vsel %vm1165, 1, 0
      %v1230 = vsel %vm1166, 1, 0
      %v1231 = vsel %vm1167, 1, 0
      %v1232 = vsel %vm1168, 1, 0
      %v1233 = vsel %vm1169, 1, 0
      %v1234 = vsel %vm1170, 1, 0
      %v1235 = vsel %vm1171, 1, 0
      %v1236 = vsel %vm1172, 1, 0
      %v1237 = vsel %vm1173, 1, 0
      %v1238 = vsel %vm1174, 1, 0
      %v1239 = vsel %vm1175, 1, 0
      %v1240 = vsel %vm1176, 1, 0
      %v1241 = vsel %vm1177, 1, 0
      %v1242 = vsel %vm1178, 1, 0
      %v1243 = vsel %vm1179, 1, 0
      %v1244 = vsel %vm1180, 1, 0
      %v1245 = vsel %vm1181, 1, 0
      %v1246 = vsel %vm1182, 1, 0
      %v1247 = vsel %vm1183, 1, 0
      %v1248 = vsel %vm1184, 1, 0
      %v1249 = vsel %vm1185, 1, 0
      %v1250 = vsel %vm1186, 1, 0
      %v1251 = vcvt.s32.f32 %v1187
      %v1252 = vcvt.s32.f32 %v1188
      %v1253 = vcvt.s32.f32 %v1189
      %v1254 = vcvt.s32.f32 %v1190
      %v1255 = vcvt.s32.f32 %v1191
      %v1256 = vcvt.s32.f32 %v1192
      %v1257 = vcvt.s32.f32 %v1193
      %v1258 = vcvt.s32.f32 %v1194
      %v1259 = vcvt.s32.f32 %v1195
      %v1260 = vcvt.s32.f32 %v1196
      %v1261 = vcvt.s32.f32 %v1197
      %v1262 = vcvt.s32.f32 %v1198
      %v1263 = vcvt.s32.f32 %v1199
      %v1264 = vcvt.s32.f32 %v1200
      %v1265 = vcvt.s32.f32 %v1201
      %v1266 = vcvt.s32.f32 %v1202
      %v1267 = vcvt.s32.f32 %v1203
      %v1268 = vcvt.s32.f32 %v1204
      %v1269 = vcvt.s32.f32 %v1205
      %v1270 = vcvt.s32.f32 %v1206
      %v1271 = vcvt.s32.f32 %v1207
      %v1272 = vcvt.s32.f32 %v1208
      %v1273 = vcvt.s32.f32 %v1209
      %v1274 = vcvt.s32.f32 %v1210
      %v1275 = vcvt.s32.f32 %v1211
      %v1276 = vcvt.s32.f32 %v1212
      %v1277 = vcvt.s32.f32 %v1213
      %v1278 = vcvt.s32.f32 %v1214
      %v1279 = vcvt.s32.f32 %v1215
      %v1280 = vcvt.s32.f32 %v1216
      %v1281 = vcvt.s32.f32 %v1217
      %v1282 = vcvt.s32.f32 %v1218
      %v1283 = vcvt.s32.f32 %v1219
      %v1284 = vcvt.s32.f32 %v1220
      %v1285 = vcvt.s32.f32 %v1221
      %v1286 = vcvt.s32.f32 %v1222
      %v1287 = vcvt.s32.f32 %v1223
      %v1288 = vcvt.s32.f32 %v1224
      %v1289 = vcvt.s32.f32 %v1225
      %v1290 = vcvt.s32.f32 %v1226
      %v1291 = vcvt.s32.f32 %v1227
      %v1292 = vcvt.s32.f32 %v1228
      %v1293 = vcvt.s32.f32 %v1229
      %v1294 = vcvt.s32.f32 %v1230
      %v1295 = vcvt.s32.f32 %v1231
      %v1296 = vcvt.s32.f32 %v1232
      %v1297 = vcvt.s32.f32 %v1233
      %v1298 = vcvt.s32.f32 %v1234
      %v1299 = vcvt.s32.f32 %v1235
      %v1300 = vcvt.s32.f32 %v1236
      %v1301 = vcvt.s32.f32 %v1237
      %v1302 = vcvt.s32.f32 %v1238
      %v1303 = vcvt.s32.f32 %v1239
      %v1304 = vcvt.s32.f32 %v1240
      %v1305 = vcvt.s32.f32 %v1241
      %v1306 = vcvt.s32.f32 %v1242
      %v1307 = vcvt.s32.f32 %v1243
      %v1308 = vcvt.s32.f32 %v1244
      %v1309 = vcvt.s32.f32 %v1245
      %v1310 = vcvt.s32.f32 %v1246
      %v1311 = vcvt.s32.f32 %v1247
      %v1312 = vcvt.s32.f32 %v1248
      %v1313 = vcvt.s32.f32 %v1249
      %v1314 = vcvt.s32.f32 %v1250
      %s1315 = ssub.s32 512, %s1057
      %p1316 = scmp.lt.s32.totalorder %s1315, 512
      %s1317 = scalar_select %p1316, %s1315, 512
      %p1318 = scmp.gt.s32.totalorder %s1317, 1
      %s1319 = scalar_select %p1318, %s1317, 1
      %v1320 = vadd.f32 %v800, %v801
      %v1321 = vadd.f32 %v1320, %v802
      %v1322 = vadd.f32 %v1321, %v803
      %v1323 = vadd.f32 %v1322, %v804
      %v1324 = vadd.f32 %v1323, %v805
      %v1325 = vadd.f32 %v1324, %v806
      %v1326 = vadd.f32 %v1325, %v807
      %v1327 = vadd.f32 %v1326, %v808
      %v1328 = vadd.f32 %v1327, %v809
      %v1329 = vadd.f32 %v1328, %v810
      %v1330 = vadd.f32 %v1329, %v811
      %v1331 = vadd.f32 %v1330, %v812
      %v1332 = vadd.f32 %v1331, %v813
      %v1333 = vadd.f32 %v1332, %v814
      %v1334 = vadd.f32 %v1333, %v815
      %v1335 = vadd.f32 %v1334, %v816
      %v1336 = vadd.f32 %v1335, %v817
      %v1337 = vadd.f32 %v1336, %v818
      %v1338 = vadd.f32 %v1337, %v819
      %v1339 = vadd.f32 %v1338, %v820
      %v1340 = vadd.f32 %v1339, %v821
      %v1341 = vadd.f32 %v1340, %v822
      %v1342 = vadd.f32 %v1341, %v823
      %v1343 = vadd.f32 %v1342, %v824
      %v1344 = vadd.f32 %v1343, %v825
      %v1345 = vadd.f32 %v1344, %v826
      %v1346 = vadd.f32 %v1345, %v827
      %v1347 = vadd.f32 %v1346, %v828
      %v1348 = vadd.f32 %v1347, %v829
      %v1349 = vadd.f32 %v1348, %v830
      %v1350 = vadd.f32 %v1349, %v831
      %v1351 = vadd.f32 %v1350, %v832
      %v1352 = vadd.f32 %v1351, %v833
      %v1353 = vadd.f32 %v1352, %v834
      %v1354 = vadd.f32 %v1353, %v835
      %v1355 = vadd.f32 %v1354, %v836
      %v1356 = vadd.f32 %v1355, %v837
      %v1357 = vadd.f32 %v1356, %v838
      %v1358 = vadd.f32 %v1357, %v839
      %v1359 = vadd.f32 %v1358, %v840
      %v1360 = vadd.f32 %v1359, %v841
      %v1361 = vadd.f32 %v1360, %v842
      %v1362 = vadd.f32 %v1361, %v843
      %v1363 = vadd.f32 %v1362, %v844
      %v1364 = vadd.f32 %v1363, %v845
      %v1365 = vadd.f32 %v1364, %v846
      %v1366 = vadd.f32 %v1365, %v847
      %v1367 = vadd.f32 %v1366, %v848
      %v1368 = vadd.f32 %v1367, %v849
      %v1369 = vadd.f32 %v1368, %v850
      %v1370 = vadd.f32 %v1369, %v851
      %v1371 = vadd.f32 %v1370, %v852
      %v1372 = vadd.f32 %v1371, %v853
      %v1373 = vadd.f32 %v1372, %v854
      %v1374 = vadd.f32 %v1373, %v855
      %v1375 = vadd.f32 %v1374, %v856
      %v1376 = vadd.f32 %v1375, %v857
      %v1377 = vadd.f32 %v1376, %v858
      %v1378 = vadd.f32 %v1377, %v859
      %v1379 = vadd.f32 %v1378, %v860
      %v1380 = vadd.f32 %v1379, %v861
      %v1381 = vadd.f32 %v1380, %v862
      %v1382 = vadd.f32 %v1381, %v863
      %v1383 = vrot.slane %v1382, 4
      %v1384 = vadd.f32 %v1382, %v1383
      %v1385 = vrot.slane %v1384, 2
      %v1386 = vadd.f32 %v1384, %v1385
      %v1387 = vrot.slane %v1386, 1
      %v1388 = vadd.f32 %v1386, %v1387
      %s1389 = scvt.s32.f32 %s1319
      %v1390 = vstv %s1389
      %v1391 = vrcp.pop %v1390
      %v1392 = vmul.f32 %v1390, %v1391
      %v1393 = vsub.f32 1.0, %v1392
      %v1394 = vmul.f32 %v1391, %v1393
      %v1395 = vadd.f32 %v1391, %v1394
      %vm1396 = vweird.f32 %v1390
      %vm1397 = vweird.f32 %v1391
      %vm1398 = vmor %vm1396, %vm1397
      %v1399 = vsel %vm1398, %v1391, %v1395
      %v1400 = vand.u32 2147483647, %v1390
      %vm1401 = vcmp.eq.f32.partialorder %v1400, 8.507059e+37
      %v1402 = vand.u32 %v1390, 2147483648
      %v1403 = vor.u32 1.1754944e-38, %v1402
      %v1404 = vsel %vm1401, %v1403, %v1399
      %s1405 = vtos %v1404
      %v1406 = vstv %s1405
      %v1407 = vmul.f32 %v1388, %v1406
      %v1408 = vsub.f32 %v800, %v1407
      %v1409 = vsub.f32 %v801, %v1407
      %v1410 = vsub.f32 %v802, %v1407
      %v1411 = vsub.f32 %v803, %v1407
      %v1412 = vsub.f32 %v804, %v1407
      %v1413 = vsub.f32 %v805, %v1407
      %v1414 = vsub.f32 %v806, %v1407
      %v1415 = vsub.f32 %v807, %v1407
      %v1416 = vsub.f32 %v808, %v1407
      %v1417 = vsub.f32 %v809, %v1407
      %v1418 = vsub.f32 %v810, %v1407
      %v1419 = vsub.f32 %v811, %v1407
      %v1420 = vsub.f32 %v812, %v1407
      %v1421 = vsub.f32 %v813, %v1407
      %v1422 = vsub.f32 %v814, %v1407
      %v1423 = vsub.f32 %v815, %v1407
      %v1424 = vsub.f32 %v816, %v1407
      %v1425 = vsub.f32 %v817, %v1407
      %v1426 = vsub.f32 %v818, %v1407
      %v1427 = vsub.f32 %v819, %v1407
      %v1428 = vsub.f32 %v820, %v1407
      %v1429 = vsub.f32 %v821, %v1407
      %v1430 = vsub.f32 %v822, %v1407
      %v1431 = vsub.f32 %v823, %v1407
      %v1432 = vsub.f32 %v824, %v1407
      %v1433 = vsub.f32 %v825, %v1407
      %v1434 = vsub.f32 %v826, %v1407
      %v1435 = vsub.f32 %v827, %v1407
      %v1436 = vsub.f32 %v828, %v1407
      %v1437 = vsub.f32 %v829, %v1407
      %v1438 = vsub.f32 %v830, %v1407
      %v1439 = vsub.f32 %v831, %v1407
      %v1440 = vsub.f32 %v832, %v1407
      %v1441 = vsub.f32 %v833, %v1407
      %v1442 = vsub.f32 %v834, %v1407
      %v1443 = vsub.f32 %v835, %v1407
      %v1444 = vsub.f32 %v836, %v1407
      %v1445 = vsub.f32 %v837, %v1407
      %v1446 = vsub.f32 %v838, %v1407
      %v1447 = vsub.f32 %v839, %v1407
      %v1448 = vsub.f32 %v840, %v1407
      %v1449 = vsub.f32 %v841, %v1407
      %v1450 = vsub.f32 %v842, %v1407
      %v1451 = vsub.f32 %v843, %v1407
      %v1452 = vsub.f32 %v844, %v1407
      %v1453 = vsub.f32 %v845, %v1407
      %v1454 = vsub.f32 %v846, %v1407
      %v1455 = vsub.f32 %v847, %v1407
      %v1456 = vsub.f32 %v848, %v1407
      %v1457 = vsub.f32 %v849, %v1407
      %v1458 = vsub.f32 %v850, %v1407
      %v1459 = vsub.f32 %v851, %v1407
      %v1460 = vsub.f32 %v852, %v1407
      %v1461 = vsub.f32 %v853, %v1407
      %v1462 = vsub.f32 %v854, %v1407
      %v1463 = vsub.f32 %v855, %v1407
      %v1464 = vsub.f32 %v856, %v1407
      %v1465 = vsub.f32 %v857, %v1407
      %v1466 = vsub.f32 %v858, %v1407
      %v1467 = vsub.f32 %v859, %v1407
      %v1468 = vsub.f32 %v860, %v1407
      %v1469 = vsub.f32 %v861, %v1407
      %v1470 = vsub.f32 %v862, %v1407
      %v1471 = vsub.f32 %v863, %v1407
      %v1472 = vmul.f32 %v1251, %v1408
      %v1473 = vmul.f32 %v1252, %v1409
      %v1474 = vmul.f32 %v1253, %v1410
      %v1475 = vmul.f32 %v1254, %v1411
      %v1476 = vmul.f32 %v1255, %v1412
      %v1477 = vmul.f32 %v1256, %v1413
      %v1478 = vmul.f32 %v1257, %v1414
      %v1479 = vmul.f32 %v1258, %v1415
      %v1480 = vmul.f32 %v1259, %v1416
      %v1481 = vmul.f32 %v1260, %v1417
      %v1482 = vmul.f32 %v1261, %v1418
      %v1483 = vmul.f32 %v1262, %v1419
      %v1484 = vmul.f32 %v1263, %v1420
      %v1485 = vmul.f32 %v1264, %v1421
      %v1486 = vmul.f32 %v1265, %v1422
      %v1487 = vmul.f32 %v1266, %v1423
      %v1488 = vmul.f32 %v1267, %v1424
      %v1489 = vmul.f32 %v1268, %v1425
      %v1490 = vmul.f32 %v1269, %v1426
      %v1491 = vmul.f32 %v1270, %v1427
      %v1492 = vmul.f32 %v1271, %v1428
      %v1493 = vmul.f32 %v1272, %v1429
      %v1494 = vmul.f32 %v1273, %v1430
      %v1495 = vmul.f32 %v1274, %v1431
      %v1496 = vmul.f32 %v1275, %v1432
      %v1497 = vmul.f32 %v1276, %v1433
      %v1498 = vmul.f32 %v1277, %v1434
      %v1499 = vmul.f32 %v1278, %v1435
      %v1500 = vmul.f32 %v1279, %v1436
      %v1501 = vmul.f32 %v1280, %v1437
      %v1502 = vmul.f32 %v1281, %v1438
      %v1503 = vmul.f32 %v1282, %v1439
      %v1504 = vmul.f32 %v1283, %v1440
      %v1505 = vmul.f32 %v1284, %v1441
      %v1506 = vmul.f32 %v1285, %v1442
      %v1507 = vmul.f32 %v1286, %v1443
      %v1508 = vmul.f32 %v1287, %v1444
      %v1509 = vmul.f32 %v1288, %v1445
      %v1510 = vmul.f32 %v1289, %v1446
      %v1511 = vmul.f32 %v1290, %v1447
      %v1512 = vmul.f32 %v1291, %v1448
      %v1513 = vmul.f32 %v1292, %v1449
      %v1514 = vmul.f32 %v1293, %v1450
      %v1515 = vmul.f32 %v1294, %v1451
      %v1516 = vmul.f32 %v1295, %v1452
      %v1517 = vmul.f32 %v1296, %v1453
      %v1518 = vmul.f32 %v1297, %v1454
      %v1519 = vmul.f32 %v1298, %v1455
      %v1520 = vmul.f32 %v1299, %v1456
      %v1521 = vmul.f32 %v1300, %v1457
      %v1522 = vmul.f32 %v1301, %v1458
      %v1523 = vmul.f32 %v1302, %v1459
      %v1524 = vmul.f32 %v1303, %v1460
      %v1525 = vmul.f32 %v1304, %v1461
      %v1526 = vmul.f32 %v1305, %v1462
      %v1527 = vmul.f32 %v1306, %v1463
      %v1528 = vmul.f32 %v1307, %v1464
      %v1529 = vmul.f32 %v1308, %v1465
      %v1530 = vmul.f32 %v1309, %v1466
      %v1531 = vmul.f32 %v1310, %v1467
      %v1532 = vmul.f32 %v1311, %v1468
      %v1533 = vmul.f32 %v1312, %v1469
      %v1534 = vmul.f32 %v1313, %v1470
      %v1535 = vmul.f32 %v1314, %v1471
      %v1536 = vmul.f32 %v1472, %v1408
      %v1537 = vmul.f32 %v1473, %v1409
      %v1538 = vmul.f32 %v1474, %v1410
      %v1539 = vmul.f32 %v1475, %v1411
      %v1540 = vmul.f32 %v1476, %v1412
      %v1541 = vmul.f32 %v1477, %v1413
      %v1542 = vmul.f32 %v1478, %v1414
      %v1543 = vmul.f32 %v1479, %v1415
      %v1544 = vmul.f32 %v1480, %v1416
      %v1545 = vmul.f32 %v1481, %v1417
      %v1546 = vmul.f32 %v1482, %v1418
      %v1547 = vmul.f32 %v1483, %v1419
      %v1548 = vmul.f32 %v1484, %v1420
      %v1549 = vmul.f32 %v1485, %v1421
      %v1550 = vmul.f32 %v1486, %v1422
      %v1551 = vmul.f32 %v1487, %v1423
      %v1552 = vmul.f32 %v1488, %v1424
      %v1553 = vmul.f32 %v1489, %v1425
      %v1554 = vmul.f32 %v1490, %v1426
      %v1555 = vmul.f32 %v1491, %v1427
      %v1556 = vmul.f32 %v1492, %v1428
      %v1557 = vmul.f32 %v1493, %v1429
      %v1558 = vmul.f32 %v1494, %v1430
      %v1559 = vmul.f32 %v1495, %v1431
      %v1560 = vmul.f32 %v1496, %v1432
      %v1561 = vmul.f32 %v1497, %v1433
      %v1562 = vmul.f32 %v1498, %v1434
      %v1563 = vmul.f32 %v1499, %v1435
      %v1564 = vmul.f32 %v1500, %v1436
      %v1565 = vmul.f32 %v1501, %v1437
      %v1566 = vmul.f32 %v1502, %v1438
      %v1567 = vmul.f32 %v1503, %v1439
      %v1568 = vmul.f32 %v1504, %v1440
      %v1569 = vmul.f32 %v1505, %v1441
      %v1570 = vmul.f32 %v1506, %v1442
      %v1571 = vmul.f32 %v1507, %v1443
      %v1572 = vmul.f32 %v1508, %v1444
      %v1573 = vmul.f32 %v1509, %v1445
      %v1574 = vmul.f32 %v1510, %v1446
      %v1575 = vmul.f32 %v1511, %v1447
      %v1576 = vmul.f32 %v1512, %v1448
      %v1577 = vmul.f32 %v1513, %v1449
      %v1578 = vmul.f32 %v1514, %v1450
      %v1579 = vmul.f32 %v1515, %v1451
      %v1580 = vmul.f32 %v1516, %v1452
      %v1581 = vmul.f32 %v1517, %v1453
      %v1582 = vmul.f32 %v1518, %v1454
      %v1583 = vmul.f32 %v1519, %v1455
      %v1584 = vmul.f32 %v1520, %v1456
      %v1585 = vmul.f32 %v1521, %v1457
      %v1586 = vmul.f32 %v1522, %v1458
      %v1587 = vmul.f32 %v1523, %v1459
      %v1588 = vmul.f32 %v1524, %v1460
      %v1589 = vmul.f32 %v1525, %v1461
      %v1590 = vmul.f32 %v1526, %v1462
      %v1591 = vmul.f32 %v1527, %v1463
      %v1592 = vmul.f32 %v1528, %v1464
      %v1593 = vmul.f32 %v1529, %v1465
      %v1594 = vmul.f32 %v1530, %v1466
      %v1595 = vmul.f32 %v1531, %v1467
      %v1596 = vmul.f32 %v1532, %v1468
      %v1597 = vmul.f32 %v1533, %v1469
      %v1598 = vmul.f32 %v1534, %v1470
      %v1599 = vmul.f32 %v1535, %v1471
      %v1600 = vadd.f32 %v1536, %v1537
      %v1601 = vadd.f32 %v1600, %v1538
      %v1602 = vadd.f32 %v1601, %v1539
      %v1603 = vadd.f32 %v1602, %v1540
      %v1604 = vadd.f32 %v1603, %v1541
      %v1605 = vadd.f32 %v1604, %v1542
      %v1606 = vadd.f32 %v1605, %v1543
      %v1607 = vadd.f32 %v1606, %v1544
      %v1608 = vadd.f32 %v1607, %v1545
      %v1609 = vadd.f32 %v1608, %v1546
      %v1610 = vadd.f32 %v1609, %v1547
      %v1611 = vadd.f32 %v1610, %v1548
      %v1612 = vadd.f32 %v1611, %v1549
      %v1613 = vadd.f32 %v1612, %v1550
      %v1614 = vadd.f32 %v1613, %v1551
      %v1615 = vadd.f32 %v1614, %v1552
      %v1616 = vadd.f32 %v1615, %v1553
      %v1617 = vadd.f32 %v1616, %v1554
      %v1618 = vadd.f32 %v1617, %v1555
      %v1619 = vadd.f32 %v1618, %v1556
      %v1620 = vadd.f32 %v1619, %v1557
      %v1621 = vadd.f32 %v1620, %v1558
      %v1622 = vadd.f32 %v1621, %v1559
      %v1623 = vadd.f32 %v1622, %v1560
      %v1624 = vadd.f32 %v1623, %v1561
      %v1625 = vadd.f32 %v1624, %v1562
      %v1626 = vadd.f32 %v1625, %v1563
      %v1627 = vadd.f32 %v1626, %v1564
      %v1628 = vadd.f32 %v1627, %v1565
      %v1629 = vadd.f32 %v1628, %v1566
      %v1630 = vadd.f32 %v1629, %v1567
      %v1631 = vadd.f32 %v1630, %v1568
      %v1632 = vadd.f32 %v1631, %v1569
      %v1633 = vadd.f32 %v1632, %v1570
      %v1634 = vadd.f32 %v1633, %v1571
      %v1635 = vadd.f32 %v1634, %v1572
      %v1636 = vadd.f32 %v1635, %v1573
      %v1637 = vadd.f32 %v1636, %v1574
      %v1638 = vadd.f32 %v1637, %v1575
      %v1639 = vadd.f32 %v1638, %v1576
      %v1640 = vadd.f32 %v1639, %v1577
      %v1641 = vadd.f32 %v1640, %v1578
      %v1642 = vadd.f32 %v1641, %v1579
      %v1643 = vadd.f32 %v1642, %v1580
      %v1644 = vadd.f32 %v1643, %v1581
      %v1645 = vadd.f32 %v1644, %v1582
      %v1646 = vadd.f32 %v1645, %v1583
      %v1647 = vadd.f32 %v1646, %v1584
      %v1648 = vadd.f32 %v1647, %v1585
      %v1649 = vadd.f32 %v1648, %v1586
      %v1650 = vadd.f32 %v1649, %v1587
      %v1651 = vadd.f32 %v1650, %v1588
      %v1652 = vadd.f32 %v1651, %v1589
      %v1653 = vadd.f32 %v1652, %v1590
      %v1654 = vadd.f32 %v1653, %v1591
      %v1655 = vadd.f32 %v1654, %v1592
      %v1656 = vadd.f32 %v1655, %v1593
      %v1657 = vadd.f32 %v1656, %v1594
      %v1658 = vadd.f32 %v1657, %v1595
      %v1659 = vadd.f32 %v1658, %v1596
      %v1660 = vadd.f32 %v1659, %v1597
      %v1661 = vadd.f32 %v1660, %v1598
      %v1662 = vadd.f32 %v1661, %v1599
      %v1663 = vrot.slane %v1662, 4
      %v1664 = vadd.f32 %v1662, %v1663
      %v1665 = vrot.slane %v1664, 2
      %v1666 = vadd.f32 %v1664, %v1665
      %v1667 = vrot.slane %v1666, 1
      %v1668 = vadd.f32 %v1666, %v1667
      %1669 = vst [vmem:[#allocation9] sm:$0xff] %v1388
      %1670 = vst [vmem:[#allocation11] sm:$0xff] %v1668
    $region25: #{tpu_custom_call.1} parent=1 // pred_fallthru
      _
    // Predicated region
    $region26: #{tpu_custom_call.1} parent=1 // pred_check
      _
    $region27: #{tpu_custom_call.1} parent=1 // pred_check_branch
      %1672 = sbr.rel (0) target = $region29
    $region28: #{tpu_custom_call.1} parent=1 // pred_region
      %1674 = vsyncadd [#allocation5], 0
      %s1675 = sshll.u32 [#allocation8], 4
      %s1676 = int_to_ptr.vmem [resolvable:$true] %s1675
      %s1677 = sshll.u32 %s2, 4
      %s1678 = int_to_ptr.hbm [resolvable:$true] %s1677
      %1683 = dma.vmem_to_hbm [thread:$0]  %s1676, 4096, %s1678, [#allocation5], 64, 64, 4
    $region29: #{tpu_custom_call.1} parent=1 // pred_fallthru
      _
    // Predicated region
    $region30: #{tpu_custom_call.1} parent=1 // pred_check
      _
    $region31: #{tpu_custom_call.1} parent=1 // pred_check_branch
      %1685 = sbr.rel (0) target = $region33
    $region32: #{tpu_custom_call.1} parent=1 // pred_region
      %1687 = vsyncadd [#allocation10], 0
      %s1689 = sshll.u32 [#allocation9], 4
      %s1690 = int_to_ptr.vmem [resolvable:$true] %s1689
      %s1691 = sshll.u32 %s3, 4
      %s1692 = int_to_ptr.hbm [resolvable:$true] %s1691
      %1694 = dma.vmem_to_hbm [thread:$0]  %s1690, 128, %s1692, [#allocation10]
    $region33: #{tpu_custom_call.1} parent=1 // pred_fallthru
      _
    // Predicated region
    $region34: #{tpu_custom_call.1} parent=1 // pred_check
      _
    $region35: #{tpu_custom_call.1} parent=1 // pred_check_branch
      %1696 = sbr.rel (0) target = $region37
    $region36: #{tpu_custom_call.1} parent=1 // pred_region
      %1698 = vsyncadd [#allocation10], 0
      %s1700 = sshll.u32 [#allocation11], 4
      %s1701 = int_to_ptr.vmem [resolvable:$true] %s1700
      %s1702 = sshll.u32 %s4, 4
      %s1703 = int_to_ptr.hbm [resolvable:$true] %s1702
      %1705 = dma.vmem_to_hbm [thread:$0]  %s1701, 128, %s1703, [#allocation10]
    $region37: #{tpu_custom_call.1} parent=1 // pred_fallthru
      _
    // Predicated region
    $region38: #{tpu_custom_call.1} parent=1 // pred_check
      _
    $region39: #{tpu_custom_call.1} parent=1 // pred_check_branch
      %1707 = sbr.rel (0) target = $region41
    $region40: #{tpu_custom_call.1} parent=1 // pred_region
      %1709 = dma.done [#allocation5], 4096
    $region41: #{tpu_custom_call.1} parent=1 // pred_fallthru
      _
    // Predicated region
    $region42: #{tpu_custom_call.1} parent=1 // pred_check
      _
    $region43: #{tpu_custom_call.1} parent=1 // pred_check_branch
      %1711 = sbr.rel (0) target = $region45
    $region44: #{tpu_custom_call.1} parent=1 // pred_region
      %1713 = dma.done [#allocation10], 128
    $region45: #{tpu_custom_call.1} parent=1 // pred_fallthru
      _
    // Predicated region
    $region46: #{tpu_custom_call.1} parent=1 // pred_check
      _
    $region47: #{tpu_custom_call.1} parent=1 // pred_check_branch
      %1715 = sbr.rel (0) target = $region49
    $region48: #{tpu_custom_call.1} parent=1 // pred_region
      %1717 = dma.done [#allocation10], 128
    $region49: #{tpu_custom_call.1} parent=1 // pred_fallthru
      _
    %1718 = vsyncpa [#allocation4], 1
    %1719 = vsyncpa [#allocation7], 1
    %1720 = vsyncpa [#allocation5], 1
    %1721 = vsyncpa [#allocation10], 1

</llo_original>
